<compile_context>
chip_gen: v7x
topology: tpu7x:2x2x1
jax: 0.10.0
libtpu: 0.0.40
codegen_flags: <defaults>
</compile_context>

<pallas_src>
import functools

import numpy as np
import jax
import jax.numpy as jnp
from jax.experimental import pallas as pl
from jax.experimental.pallas import tpu as pltpu

B1_DEFAULT = (0.0, 0.5, 0.9, 0.99, 0.999)
B2_DEFAULT = (0.5, 0.9, 0.99, 0.999, 0.9999)
N_TIMECODE = 3
HIDDEN_SZ = 40
EPS = 1e-9


def _round_up(x, m):
    return ((x + m - 1) // m) * m


_CHIP_CFG = None


def _chip_config():
    """Generation-aware tiling knobs (computed once, lazily)."""
    global _CHIP_CFG
    if _CHIP_CFG is not None:
        return _CHIP_CFG
    try:
        kind = (getattr(jax.devices()[0], "device_kind", "") or "").lower()
    except Exception:
        kind = ""
    gen = 0
    for g in (7, 6, 5, 4):
        if ("v%d" % g) in kind or ("tpu%d" % g) in kind:
            gen = g
            break
    if gen >= 7:
        # 2 TensorCores / 64 MiB VMEM / 3.2 TB/s: keep >=4 grid steps so both
        # cores stay fed; keep lane-dense (hidden, TN) stores (masked stores
        # from an in-kernel transpose would surface under the small HBM budget).
        _CHIP_CFG = dict(min_steps=4, max_tile=32768,
                         vmem_bytes=40 * 1024 * 1024, inkernel_transpose=False)
    else:
        # Single TensorCore (v5e/v6e/unknown): only 2 grid steps needed, big
        # tiles, and the in-kernel x transpose hides under the per-tile HBM
        # time.  Tile capped at 16384 so the transposed f32 temporaries plus
        # double-buffered blocks stay well inside the scoped VMEM limit.
        _CHIP_CFG = dict(min_steps=2, max_tile=16384,
                         vmem_bytes=64 * 1024 * 1024, inkernel_transpose=True)
    return _CHIP_CFG


def _choose_tile(n_params, max_tile, min_steps):
    """Lane-axis tile: as big as possible, keeping >= min_steps grid steps
    when there is enough work."""
    n128 = _round_up(max(n_params, 1), 128)
    tile = min(max_tile, n128)
    if n128 // tile < min_steps and n128 >= min_steps * 128:
        tile = _round_up(-(-n128 // min_steps), 128)
    return tile


# --------------------------------------------------------------------------
# Kernels (feature-major compute: features on sublanes, coordinates on lanes)
# --------------------------------------------------------------------------

def _emit_x(m, v, inv1, inv2, w, bias, x_ref, x_transposed):
    m_hat = m * inv1                   # inv1 = 1/(1 - b1_t), host-precomputed
    v_hat = v * inv2                   # inv2 = 1/(1 - b2_t)
    # eps placement identical to torch: m_hat / (sqrt(v_hat) + eps).  The
    # approximate reciprocal runs on the EUP (its own bundle slot); documented
    # ~1e-3-level divergence vs an exact divide is accepted.
    scaled_m = m_hat * pl.reciprocal(jnp.sqrt(v_hat) + EPS, approx=True)
    # Linear(8 -> 40): momentum columns on the MXU; time-code columns and the
    # bias are folded into one per-step constant vector (bias).
    h = jnp.dot(w, scaled_m, preferred_element_type=jnp.float32) + bias
    x = jnp.maximum(h, 0.0)            # ReLU, (hidden, TN)
    if x_transposed:                   # torch layout straight out of the kernel
        x = x.T                        # (TN, hidden); XLU work, hidden by DMA
    x_ref[...] = x.astype(x_ref.dtype)


def _steady_kernel(x_transposed,
                   g_ref, m_prev_ref, v_prev_ref,
                   b1_ref, omb1_ref, b2_ref, omb2_ref, inv1_ref, inv2_ref,
                   w_ref, bias_ref,
                   x_ref, m_out_ref, v_out_ref):
    g = g_ref[...]                                            # (1, TN)
    m = b1_ref[...] * m_prev_ref[...] + omb1_ref[...] * g     # (K, TN)
    v = b2_ref[...] * v_prev_ref[...] + omb2_ref[...] * (g * g)
    m_out_ref[...] = m
    v_out_ref[...] = v
    _emit_x(m, v, inv1_ref[...], inv2_ref[...], w_ref[...], bias_ref[...],
            x_ref, x_transposed)


def _first_kernel(x_transposed,
                  g_ref, inv1_ref, inv2_ref, w_ref, bias_ref,
                  x_ref, m_out_ref, v_out_ref):
    # First call: m = g.repeat(1, K), v = g^2.repeat(1, K) (feature-major);
    # seeding in-kernel avoids the HBM round-trip of tile(g)/tile(g*g).
    g = g_ref[...]
    m = jnp.broadcast_to(g, m_out_ref.shape)
    v = jnp.broadcast_to(g * g, v_out_ref.shape)
    m_out_ref[...] = m
    v_out_ref[...] = v
    _emit_x(m, v, inv1_ref[...], inv2_ref[...], w_ref[...], bias_ref[...],
            x_ref, x_transposed)


# --------------------------------------------------------------------------
# pallas_call wrappers (jitted; pad + kernel + v_sqrt/layout glue fused)
# --------------------------------------------------------------------------

def _coord_spec(rows, tile):
    return pl.BlockSpec((rows, tile), lambda i: (0, i))


def _const_spec(shape):
    return pl.BlockSpec(shape, lambda i: (0, 0))


def _x_out(n_pad, tile, hidden, out_dtype, x_transposed):
    if x_transposed:
        return (jax.ShapeDtypeStruct((n_pad, hidden), out_dtype),
                pl.BlockSpec((tile, hidden), lambda i: (i, 0)))
    return (jax.ShapeDtypeStruct((hidden, n_pad), out_dtype),
            pl.BlockSpec((hidden, tile), lambda i: (0, i)))


def _compiler_params(vmem_limit_bytes):
    return pltpu.CompilerParams(dimension_semantics=("parallel",),
                                vmem_limit_bytes=vmem_limit_bytes)


def _postprocess(x_out, m_new, v_new, inv2, n_params, torch_layout, x_transposed):
    # v_sqrt derived from the persisted v inside the same jit (fused mul +
    # sqrt + transpose + slice); the kernel never writes a v_sqrt slab.
    v_sqrt_fm = jnp.sqrt(v_new[:, :n_params] * inv2)          # (K, n_params)
    if torch_layout:
        x = x_out[:n_params, :] if x_transposed else x_out[:, :n_params].T
        v_sqrt = v_sqrt_fm.T
    else:
        x = x_out[:n_params, :].T if x_transposed else x_out[:, :n_params]
        v_sqrt = v_sqrt_fm
    return x, v_sqrt, m_new, v_new


def _forward_first_impl(g, inv1, inv2, w_m, fused_bias, *,
                        n_params, tile_n, out_dtype, x_transposed,
                        torch_layout, vmem_limit_bytes):
    k = inv1.shape[0]
    hidden = w_m.shape[0]
    n_pad = _round_up(n_params, tile_n)
    g_fm = jnp.pad(jnp.reshape(g.astype(jnp.float32), (1, n_params)),
                   ((0, 0), (0, n_pad - n_params)))
    x_shape, x_spec = _x_out(n_pad, tile_n, hidden, out_dtype, x_transposed)
    x_out, m_new, v_new = pl.pallas_call(
        functools.partial(_first_kernel, x_transposed),
        out_shape=(x_shape,
                   jax.ShapeDtypeStruct((k, n_pad), jnp.float32),
                   jax.ShapeDtypeStruct((k, n_pad), jnp.float32)),
        grid_spec=pltpu.PrefetchScalarGridSpec(
            num_scalar_prefetch=0,
            grid=(n_pad // tile_n,),
            in_specs=[
                _coord_spec(1, tile_n),        # g
                _const_spec((k, 1)),           # 1/(1 - b1_t)
                _const_spec((k, 1)),           # 1/(1 - b2_t)
                _const_spec((hidden, k)),      # W momentum columns
                _const_spec((hidden, 1)),      # fused bias = b + W_t @ t_enc
            ],
            out_specs=[x_spec, _coord_spec(k, tile_n), _coord_spec(k, tile_n)]),
        compiler_params=_compiler_params(vmem_limit_bytes),
    )(g_fm, inv1, inv2, w_m, fused_bias)
    return _postprocess(x_out, m_new, v_new, inv2, n_params,
                        torch_layout, x_transposed)


def _forward_steady_impl(g, m_prev, v_prev, b1, omb1, b2, omb2, inv1, inv2,
                         w_m, fused_bias, *,
                         n_params, tile_n, out_dtype, x_transposed,
                         torch_layout, vmem_limit_bytes):
    k, n_pad = m_prev.shape
    hidden = w_m.shape[0]
    g_fm = jnp.pad(jnp.reshape(g.astype(jnp.float32), (1, n_params)),
                   ((0, 0), (0, n_pad - n_params)))
    x_shape, x_spec = _x_out(n_pad, tile_n, hidden, out_dtype, x_transposed)
    x_out, m_new, v_new = pl.pallas_call(
        functools.partial(_steady_kernel, x_transposed),
        out_shape=(x_shape,
                   jax.ShapeDtypeStruct((k, n_pad), jnp.float32),
                   jax.ShapeDtypeStruct((k, n_pad), jnp.float32)),
        grid_spec=pltpu.PrefetchScalarGridSpec(
            num_scalar_prefetch=0,
            grid=(n_pad // tile_n,),
            in_specs=[
                _coord_spec(1, tile_n),        # g
                _coord_spec(k, tile_n),        # m_prev
                _coord_spec(k, tile_n),        # v_prev
                _const_spec((k, 1)),           # b1
                _const_spec((k, 1)),           # 1 - b1   (host precomputed)
                _const_spec((k, 1)),           # b2
                _const_spec((k, 1)),           # 1 - b2
                _const_spec((k, 1)),           # 1/(1 - b1_t)
                _const_spec((k, 1)),           # 1/(1 - b2_t)
                _const_spec((hidden, k)),      # W momentum columns
                _const_spec((hidden, 1)),      # fused bias = b + W_t @ t_enc
            ],
            out_specs=[x_spec, _coord_spec(k, tile_n), _coord_spec(k, tile_n)]),
        # In-place moment update: m_prev -> m_new, v_prev -> v_new.
        input_output_aliases={1: 1, 2: 2},
        compiler_params=_compiler_params(vmem_limit_bytes),
    )(g_fm, m_prev, v_prev, b1, omb1, b2, omb2, inv1, inv2, w_m, fused_bias)
    return _postprocess(x_out, m_new, v_new, inv2, n_params,
                        torch_layout, x_transposed)


_STATIC = ("n_params", "tile_n", "out_dtype", "x_transposed",
           "torch_layout", "vmem_limit_bytes")
_fwd_first = jax.jit(_forward_first_impl, static_argnames=_STATIC)
# step=True donates the moment state so the in-place aliasing is real buffer
# reuse; step=False keeps the old state valid (XLA inserts the copy).
_fwd_steady_step = jax.jit(_forward_steady_impl, static_argnames=_STATIC,
                           donate_argnums=(1, 2))
_fwd_steady_nostep = jax.jit(_forward_steady_impl, static_argnames=_STATIC)


# --------------------------------------------------------------------------
# Module-level wrapper mirroring the PyTorch FeatureGenerator
# --------------------------------------------------------------------------

class FeatureGenerator:
    """JAX/Pallas port of the PyTorch FeatureGenerator (maskgen_bnn2).

    forward(g) returns (x, v_sqrt) in the torch layout
    ((n*n_params, hidden_sz), (n_params, K)) by default.  With
    feature_major_outputs=True the slabs are returned feature-major
    ((hidden_sz, n*n_params), (K, n_params)) and no transpose pass is paid.
    x is bfloat16 by default (halves the dominant HBM write); pass
    out_dtype=jnp.float32 for exact float32 outputs.
    """

    def __init__(self, hidden_sz=HIDDEN_SZ, batch_std_norm=False,
                 n_timecode=N_TIMECODE, b1=B1_DEFAULT, b2=B2_DEFAULT,
                 drop_rate=0.0, seed=0, out_dtype=jnp.bfloat16,
                 feature_major_outputs=False):
        assert len(b1) == len(b2)
        self.k = len(b1)
        self.input_sz = self.k + n_timecode
        self.hidden_sz = hidden_sz
        self.batch_std_norm = batch_std_norm
        self.drop_rate = drop_rate
        self.out_dtype = out_dtype
        self.feature_major_outputs = feature_major_outputs

        self.b1 = jnp.asarray(b1, jnp.float32).reshape(self.k, 1)
        self.b2 = jnp.asarray(b2, jnp.float32).reshape(self.k, 1)
        self.omb1 = 1.0 - self.b1
        self.omb2 = 1.0 - self.b2
        self.t_scales = np.linspace(1.0, np.log(1000) / np.log(10), n_timecode)

        # deterministic Linear(input_sz, hidden_sz) init (torch-style uniform)
        key_w, key_b = jax.random.split(jax.random.PRNGKey(seed))
        bound = 1.0 / np.sqrt(self.input_sz)
        w = jax.random.uniform(key_w, (hidden_sz, self.input_sz), jnp.float32,
                               -bound, bound)            # torch layout (out, in)
        b = jax.random.uniform(key_b, (hidden_sz,), jnp.float32, -bound, bound)
        self.w_m = w[:, :self.k]                         # momentum columns
        self.w_t = w[:, self.k:]                         # time-code columns
        self.bias = b.reshape(hidden_sz, 1)

        cfg = _chip_config()
        self._min_steps = cfg["min_steps"]
        self._max_tile = cfg["max_tile"]
        self._vmem_bytes = cfg["vmem_bytes"]
        self._inkernel_transpose = cfg["inkernel_transpose"]

        self.new()

    def new(self):
        self.m = None
        self.v = None
        self.b1_t = jnp.ones((self.k, 1), jnp.float32)
        self.b2_t = jnp.ones((self.k, 1), jnp.float32)
        self.t = 0
        return self

    def _t_encode(self, t):
        vals = np.tanh(3.0 * t / 10.0 ** self.t_scales - 1.0).astype(np.float32)
        return jnp.asarray(vals).reshape(-1, 1)          # (n_timecode, 1)

    def forward(self, g, p=None, n=1, step=True):
        if self.batch_std_norm:
            # TODO(synk): batch_std_norm branch references an undefined weight
            # tensor in the reference module; not implemented here.
            raise NotImplementedError("batch_std_norm is not supported")
        g = jnp.asarray(g)
        n_params = int(g.shape[0])
        tile_n = _choose_tile(n_params, self._max_tile, self._min_steps)

        b1_t = self.b1_t * self.b1
        b2_t = self.b2_t * self.b2
        inv1 = 1.0 / (1.0 - b1_t)          # tiny K-element work
        inv2 = 1.0 / (1.0 - b2_t)

        # torch increments t (and uses the advanced time-code) even when
        # step=False, while m/v/b1_t/b2_t are only persisted when step=True.
        self.t += 1
        # The time code is identical for every coordinate -> fold it and the
        # bias into one per-step constant vector: bias + W_t @ t_enc.
        fused_bias = self.bias + self.w_t @ self._t_encode(self.t)

        torch_layout = not self.feature_major_outputs
        want_transposed = bool(torch_layout and self._inkernel_transpose)
        common = dict(n_params=n_params, tile_n=tile_n,
                      out_dtype=self.out_dtype, torch_layout=torch_layout,
                      vmem_limit_bytes=self._vmem_bytes)

        def run(x_transposed):
            if self.m is None:
                return _fwd_first(g, inv1, inv2, self.w_m, fused_bias,
                                  x_transposed=x_transposed, **common)
            assert self.m.shape[1] == _round_up(n_params, tile_n), \
                "n_params changed between steps; call .new() first"
            fn = _fwd_steady_step if step else _fwd_steady_nostep
            return fn(g, self.m, self.v, self.b1, self.omb1, self.b2,
                      self.omb2, inv1, inv2, self.w_m, fused_bias,
                      x_transposed=x_transposed, **common)

        if want_transposed:
            try:
                x, v_sqrt, m_new, v_new = run(True)
            except Exception:
                # In-kernel transpose failed to lower on this chip/runtime;
                # fall back to lane-dense stores + fused wrapper transpose.
                self._inkernel_transpose = False
                x, v_sqrt, m_new, v_new = run(False)
        else:
            x, v_sqrt, m_new, v_new = run(False)

        if step:
            self.m, self.v = m_new, v_new
            self.b1_t, self.b2_t = b1_t, b2_t

        if n > 1:
            # TODO(synk): with drop_rate == 0 the n copies are identical;
            # consumers should broadcast instead of materializing them.
            x = jnp.concatenate([x] * n, axis=0 if torch_layout else 1)
        drop_p = self.drop_rate if p is None else p
        # F.dropout with p = 0.0 is the identity.
        # TODO(synk): pltpu.prng-based MC-dropout for drop_p > 0.
        assert drop_p == 0.0, "non-zero dropout not implemented in this port"
        return x, v_sqrt

    __call__ = forward


# --------------------------------------------------------------------------
# Self-test
# --------------------------------------------------------------------------

class _TorchRef:
    """Pure-NumPy float32 mirror of the PyTorch forward (source of truth)."""

    def __init__(self, fg):
        self.b1 = np.asarray(fg.b1).reshape(1, -1)
        self.b2 = np.asarray(fg.b2).reshape(1, -1)
        self.w = np.concatenate([np.asarray(fg.w_m), np.asarray(fg.w_t)], 1)
        self.b = np.asarray(fg.bias).reshape(-1)
        self.t_scales = fg.t_scales
        self.m = None
        self.v = None
        self.b1_t = 1.0
        self.b2_t = 1.0
        self.t = 0

    def forward(self, g, n=1, step=True):
        g = np.asarray(g, np.float32).reshape(-1, 1)
        g_sq = g ** 2
        if self.m is None:
            m = np.repeat(g, self.b1.shape[1], 1)
            v = np.repeat(g_sq, self.b2.shape[1], 1)
        else:
            m = self.b1 * self.m + (1 - self.b1) * g
            v = self.b2 * self.v + (1 - self.b2) * g_sq
        b1_t = self.b1_t * self.b1
        b2_t = self.b2_t * self.b2
        m_hat = m / (1 - b1_t)
        v_hat = v / (1 - b2_t)
        v_sqrt = np.sqrt(v_hat)
        scaled_m = m_hat / (v_sqrt + EPS)
        self.t += 1
        t_enc = np.array([np.tanh(3.0 * self.t / 10.0 ** s - 1.0)
                          for s in self.t_scales], np.float32)
        t_rep = np.repeat(t_enc[None, :], g.shape[0], 0)
        x_in = np.concatenate([scaled_m, t_rep], 1).astype(np.float32)
        if step:
            self.m, self.v, self.b1_t, self.b2_t = m, v, b1_t, b2_t
        x = np.maximum(x_in @ self.w.T + self.b, 0.0)
        x = np.concatenate([x] * n, 0)
        return x, v_sqrt


if __name__ == "__main__":
    key = jax.random.PRNGKey(0)
    n_params = 1024                        # small demo shape
    g1 = jax.random.normal(key, (n_params, 1), jnp.float32)
    g2 = 0.5 * g1
    g3 = 0.25 * g1

    fg = FeatureGenerator(seed=0)          # default: bf16 x, torch layout
    ref = _TorchRef(fg)

    x1, vs1 = fg.forward(g1, n=1, step=True)     # first step (m is None)
    x2, vs2 = fg.forward(g2, n=2, step=True)     # EMA path + n>1
    x3, vs3 = fg.forward(g3, n=1, step=False)    # no-step path
    jax.block_until_ready((x1, vs1, x2, vs2, x3, vs3))

    rx1, rvs1 = ref.forward(np.asarray(g1), n=1, step=True)
    rx2, rvs2 = ref.forward(np.asarray(g2), n=2, step=True)
    rx3, rvs3 = ref.forward(np.asarray(g3), n=1, step=False)

    assert x1.shape == (n_params, fg.hidden_sz)
    assert x2.shape == (2 * n_params, fg.hidden_sz)
    assert x3.shape == (n_params, fg.hidden_sz)
    assert vs1.shape == (n_params, fg.k)

    def _f32(a):
        return np.asarray(jnp.asarray(a, jnp.float32))

    # x: bf16 output + EUP approximate reciprocal -> loose tolerance.
    for got, want in ((x1, rx1), (x2, rx2), (x3, rx3)):
        np.testing.assert_allclose(_f32(got), want, rtol=2e-2, atol=5e-2)
    # v_sqrt stays float32 and exact (no approx reciprocal on its path).
    for got, want in ((vs1, rvs1), (vs2, rvs2), (vs3, rvs3)):
        np.testing.assert_allclose(_f32(got), want, rtol=1e-4, atol=1e-6)

    assert bool(jnp.all(jnp.isfinite(jnp.asarray(x2, jnp.float32))))
    print("KERNEL_OK")
</pallas_src>

<mosaic_0001>
module attributes {stable_mosaic.version = 11 : i64} {
  func.func @_first_kernel(%arg0: i32, %arg1: memref<1x512xf32, #tpu.memory_space<vmem>>, %arg2: memref<5x1xf32, #tpu.memory_space<vmem>>, %arg3: memref<5x1xf32, #tpu.memory_space<vmem>>, %arg4: memref<40x5xf32, #tpu.memory_space<vmem>>, %arg5: memref<40x1xf32, #tpu.memory_space<vmem>>, %arg6: memref<512x40xbf16, #tpu.memory_space<vmem>>, %arg7: memref<5x512xf32, #tpu.memory_space<vmem>>, %arg8: memref<5x512xf32, #tpu.memory_space<vmem>>) attributes {dimension_semantics = [#tpu.dimension_semantics<parallel>], iteration_bounds = array<i64: 2>, scalar_prefetch = 0 : i64, scratch_operands = 0 : i64, tpu.core_type = #tpu.core_type<tc>, window_params = [{transform_indices = @transform_0, window_bounds = array<i64: 1, 512>}, {pipeline_mode = #tpu.pipeline_mode<synchronous>, transform_indices = @transform_1, window_bounds = array<i64: 5, 1>}, {pipeline_mode = #tpu.pipeline_mode<synchronous>, transform_indices = @transform_2, window_bounds = array<i64: 5, 1>}, {pipeline_mode = #tpu.pipeline_mode<synchronous>, transform_indices = @transform_3, window_bounds = array<i64: 40, 5>}, {pipeline_mode = #tpu.pipeline_mode<synchronous>, transform_indices = @transform_4, window_bounds = array<i64: 40, 1>}, {transform_indices = @transform_5, window_bounds = array<i64: 512, 40>}, {transform_indices = @transform_6, window_bounds = array<i64: 5, 512>}, {transform_indices = @transform_7, window_bounds = array<i64: 5, 512>}]} {
    %c0 = arith.constant 0 : index
    %c0_0 = arith.constant 0 : index
    %0 = vector.load %arg1[%c0, %c0_0] : memref<1x512xf32, #tpu.memory_space<vmem>>, vector<1x512xf32>
    %1 = vector.shape_cast %0 : vector<1x512xf32> to vector<1x512xf32>
    %2 = vector.broadcast %1 : vector<1x512xf32> to vector<5x512xf32>
    %3 = arith.mulf %0, %0 : vector<1x512xf32>
    %4 = vector.shape_cast %3 : vector<1x512xf32> to vector<1x512xf32>
    %5 = vector.broadcast %4 : vector<1x512xf32> to vector<5x512xf32>
    %c0_1 = arith.constant 0 : index
    %c0_2 = arith.constant 0 : index
    %6 = vector.load %arg7[%c0_1, %c0_2] : memref<5x512xf32, #tpu.memory_space<vmem>>, vector<5x512xf32>
    tpu.vector_store %arg7[%c0_1, %c0_2], %2 {strides = array<i32>} : memref<5x512xf32, #tpu.memory_space<vmem>>, vector<5x512xf32>,
    %c0_3 = arith.constant 0 : index
    %c0_4 = arith.constant 0 : index
    %7 = vector.load %arg8[%c0_3, %c0_4] : memref<5x512xf32, #tpu.memory_space<vmem>>, vector<5x512xf32>
    tpu.vector_store %arg8[%c0_3, %c0_4], %5 {strides = array<i32>} : memref<5x512xf32, #tpu.memory_space<vmem>>, vector<5x512xf32>,
    %c0_5 = arith.constant 0 : index
    %c0_6 = arith.constant 0 : index
    %8 = vector.load %arg2[%c0_5, %c0_6] : memref<5x1xf32, #tpu.memory_space<vmem>>, vector<5x1xf32>
    %c0_7 = arith.constant 0 : index
    %c0_8 = arith.constant 0 : index
    %9 = vector.load %arg3[%c0_7, %c0_8] : memref<5x1xf32, #tpu.memory_space<vmem>>, vector<5x1xf32>
    %c0_9 = arith.constant 0 : index
    %c0_10 = arith.constant 0 : index
    %10 = vector.load %arg4[%c0_9, %c0_10] : memref<40x5xf32, #tpu.memory_space<vmem>>, vector<40x5xf32>
    %c0_11 = arith.constant 0 : index
    %c0_12 = arith.constant 0 : index
    %11 = vector.load %arg5[%c0_11, %c0_12] : memref<40x1xf32, #tpu.memory_space<vmem>>, vector<40x1xf32>
    %12 = vector.broadcast %8 : vector<5x1xf32> to vector<5x512xf32>
    %13 = arith.mulf %2, %12 : vector<5x512xf32>
    %14 = vector.broadcast %9 : vector<5x1xf32> to vector<5x512xf32>
    %15 = arith.mulf %5, %14 : vector<5x512xf32>
    %16 = math.sqrt %15 : vector<5x512xf32>
    %cst = arith.constant 9.99999971E-10 : f32
    %17 = vector.broadcast %cst : f32 to vector<5x512xf32>
    %18 = arith.addf %16, %17 : vector<5x512xf32>
    %19 = tpu.reciprocal %18 {approx = true} : vector<5x512xf32> -> vector<5x512xf32>
    %20 = arith.mulf %13, %19 : vector<5x512xf32>
    %cst_13 = arith.constant dense<0.000000e+00> : vector<40x512xf32>
    %21 = tpu.matmul %10, %20, %cst_13 {dimension_numbers = #tpu.dot_dimension_numbers<[1], [0], [0], [1], [0, 0, 1, 1], [], []>} : vector<40x5xf32>, vector<5x512xf32>, vector<40x512xf32> -> vector<40x512xf32>
    %22 = vector.broadcast %11 : vector<40x1xf32> to vector<40x512xf32>
    %23 = arith.addf %21, %22 : vector<40x512xf32>
    %cst_14 = arith.constant 0.000000e+00 : f32
    %24 = vector.broadcast %cst_14 : f32 to vector<40x512xf32>
    %25 = arith.maximumf %23, %24 : vector<40x512xf32>
    %26 = tpu.transpose %25, [1, 0] : vector<40x512xf32> -> vector<512x40xf32>
    %27 = arith.truncf %26 : vector<512x40xf32> to vector<512x40xbf16>
    %c0_15 = arith.constant 0 : index
    %c0_16 = arith.constant 0 : index
    %28 = vector.load %arg6[%c0_15, %c0_16] : memref<512x40xbf16, #tpu.memory_space<vmem>>, vector<512x40xbf16>
    tpu.vector_store %arg6[%c0_15, %c0_16], %27 {strides = array<i32>} : memref<512x40xbf16, #tpu.memory_space<vmem>>, vector<512x40xbf16>,
    return
  }
  func.func @transform_0(%arg0: i32) -> (i32, i32) {
    %c0_i32 = arith.constant 0 : i32
    %c0_i32_0 = arith.constant 0 : i32
    return %c0_i32, %arg0 : i32, i32
  }
  func.func @transform_1(%arg0: i32) -> (i32, i32) {
    %c0_i32 = arith.constant 0 : i32
    %c0_i32_0 = arith.constant 0 : i32
    %c0_i32_1 = arith.constant 0 : i32
    return %c0_i32, %c0_i32_0 : i32, i32
  }
  func.func @transform_2(%arg0: i32) -> (i32, i32) {
    %c0_i32 = arith.constant 0 : i32
    %c0_i32_0 = arith.constant 0 : i32
    %c0_i32_1 = arith.constant 0 : i32
    return %c0_i32, %c0_i32_0 : i32, i32
  }
  func.func @transform_3(%arg0: i32) -> (i32, i32) {
    %c0_i32 = arith.constant 0 : i32
    %c0_i32_0 = arith.constant 0 : i32
    %c0_i32_1 = arith.constant 0 : i32
    return %c0_i32, %c0_i32_0 : i32, i32
  }
  func.func @transform_4(%arg0: i32) -> (i32, i32) {
    %c0_i32 = arith.constant 0 : i32
    %c0_i32_0 = arith.constant 0 : i32
    %c0_i32_1 = arith.constant 0 : i32
    return %c0_i32, %c0_i32_0 : i32, i32
  }
  func.func @transform_5(%arg0: i32) -> (i32, i32) {
    %c0_i32 = arith.constant 0 : i32
    %c0_i32_0 = arith.constant 0 : i32
    return %arg0, %c0_i32 : i32, i32
  }
  func.func @transform_6(%arg0: i32) -> (i32, i32) {
    %c0_i32 = arith.constant 0 : i32
    %c0_i32_0 = arith.constant 0 : i32
    return %c0_i32, %arg0 : i32, i32
  }
  func.func @transform_7(%arg0: i32) -> (i32, i32) {
    %c0_i32 = arith.constant 0 : i32
    %c0_i32_0 = arith.constant 0 : i32
    return %c0_i32, %arg0 : i32, i32
  }
}

module attributes {stable_mosaic.version = 11 : i64} {
  func.func @_first_kernel(%arg0: i32, %arg1: memref<1x512xf32, #tpu.memory_space<vmem>>, %arg2: memref<5x1xf32, #tpu.memory_space<vmem>>, %arg3: memref<5x1xf32, #tpu.memory_space<vmem>>, %arg4: memref<40x5xf32, #tpu.memory_space<vmem>>, %arg5: memref<40x1xf32, #tpu.memory_space<vmem>>, %arg6: memref<40x512xbf16, #tpu.memory_space<vmem>>, %arg7: memref<5x512xf32, #tpu.memory_space<vmem>>, %arg8: memref<5x512xf32, #tpu.memory_space<vmem>>) attributes {dimension_semantics = [#tpu.dimension_semantics<parallel>], iteration_bounds = array<i64: 2>, scalar_prefetch = 0 : i64, scratch_operands = 0 : i64, tpu.core_type = #tpu.core_type<tc>, window_params = [{transform_indices = @transform_0, window_bounds = array<i64: 1, 512>}, {pipeline_mode = #tpu.pipeline_mode<synchronous>, transform_indices = @transform_1, window_bounds = array<i64: 5, 1>}, {pipeline_mode = #tpu.pipeline_mode<synchronous>, transform_indices = @transform_2, window_bounds = array<i64: 5, 1>}, {pipeline_mode = #tpu.pipeline_mode<synchronous>, transform_indices = @transform_3, window_bounds = array<i64: 40, 5>}, {pipeline_mode = #tpu.pipeline_mode<synchronous>, transform_indices = @transform_4, window_bounds = array<i64: 40, 1>}, {transform_indices = @transform_5, window_bounds = array<i64: 40, 512>}, {transform_indices = @transform_6, window_bounds = array<i64: 5, 512>}, {transform_indices = @transform_7, window_bounds = array<i64: 5, 512>}]} {
    %c0 = arith.constant 0 : index
    %c0_0 = arith.constant 0 : index
    %0 = vector.load %arg1[%c0, %c0_0] : memref<1x512xf32, #tpu.memory_space<vmem>>, vector<1x512xf32>
    %1 = vector.shape_cast %0 : vector<1x512xf32> to vector<1x512xf32>
    %2 = vector.broadcast %1 : vector<1x512xf32> to vector<5x512xf32>
    %3 = arith.mulf %0, %0 : vector<1x512xf32>
    %4 = vector.shape_cast %3 : vector<1x512xf32> to vector<1x512xf32>
    %5 = vector.broadcast %4 : vector<1x512xf32> to vector<5x512xf32>
    %c0_1 = arith.constant 0 : index
    %c0_2 = arith.constant 0 : index
    %6 = vector.load %arg7[%c0_1, %c0_2] : memref<5x512xf32, #tpu.memory_space<vmem>>, vector<5x512xf32>
    tpu.vector_store %arg7[%c0_1, %c0_2], %2 {strides = array<i32>} : memref<5x512xf32, #tpu.memory_space<vmem>>, vector<5x512xf32>,
    %c0_3 = arith.constant 0 : index
    %c0_4 = arith.constant 0 : index
    %7 = vector.load %arg8[%c0_3, %c0_4] : memref<5x512xf32, #tpu.memory_space<vmem>>, vector<5x512xf32>
    tpu.vector_store %arg8[%c0_3, %c0_4], %5 {strides = array<i32>} : memref<5x512xf32, #tpu.memory_space<vmem>>, vector<5x512xf32>,
    %c0_5 = arith.constant 0 : index
    %c0_6 = arith.constant 0 : index
    %8 = vector.load %arg2[%c0_5, %c0_6] : memref<5x1xf32, #tpu.memory_space<vmem>>, vector<5x1xf32>
    %c0_7 = arith.constant 0 : index
    %c0_8 = arith.constant 0 : index
    %9 = vector.load %arg3[%c0_7, %c0_8] : memref<5x1xf32, #tpu.memory_space<vmem>>, vector<5x1xf32>
    %c0_9 = arith.constant 0 : index
    %c0_10 = arith.constant 0 : index
    %10 = vector.load %arg4[%c0_9, %c0_10] : memref<40x5xf32, #tpu.memory_space<vmem>>, vector<40x5xf32>
    %c0_11 = arith.constant 0 : index
    %c0_12 = arith.constant 0 : index
    %11 = vector.load %arg5[%c0_11, %c0_12] : memref<40x1xf32, #tpu.memory_space<vmem>>, vector<40x1xf32>
    %12 = vector.broadcast %8 : vector<5x1xf32> to vector<5x512xf32>
    %13 = arith.mulf %2, %12 : vector<5x512xf32>
    %14 = vector.broadcast %9 : vector<5x1xf32> to vector<5x512xf32>
    %15 = arith.mulf %5, %14 : vector<5x512xf32>
    %16 = math.sqrt %15 : vector<5x512xf32>
    %cst = arith.constant 9.99999971E-10 : f32
    %17 = vector.broadcast %cst : f32 to vector<5x512xf32>
    %18 = arith.addf %16, %17 : vector<5x512xf32>
    %19 = tpu.reciprocal %18 {approx = true} : vector<5x512xf32> -> vector<5x512xf32>
    %20 = arith.mulf %13, %19 : vector<5x512xf32>
    %cst_13 = arith.constant dense<0.000000e+00> : vector<40x512xf32>
    %21 = tpu.matmul %10, %20, %cst_13 {dimension_numbers = #tpu.dot_dimension_numbers<[1], [0], [0], [1], [0, 0, 1, 1], [], []>} : vector<40x5xf32>, vector<5x512xf32>, vector<40x512xf32> -> vector<40x512xf32>
    %22 = vector.broadcast %11 : vector<40x1xf32> to vector<40x512xf32>
    %23 = arith.addf %21, %22 : vector<40x512xf32>
    %cst_14 = arith.constant 0.000000e+00 : f32
    %24 = vector.broadcast %cst_14 : f32 to vector<40x512xf32>
    %25 = arith.maximumf %23, %24 : vector<40x512xf32>
    %26 = arith.truncf %25 : vector<40x512xf32> to vector<40x512xbf16>
    %c0_15 = arith.constant 0 : index
    %c0_16 = arith.constant 0 : index
    %27 = vector.load %arg6[%c0_15, %c0_16] : memref<40x512xbf16, #tpu.memory_space<vmem>>, vector<40x512xbf16>
    tpu.vector_store %arg6[%c0_15, %c0_16], %26 {strides = array<i32>} : memref<40x512xbf16, #tpu.memory_space<vmem>>, vector<40x512xbf16>,
    return
  }
  func.func @transform_0(%arg0: i32) -> (i32, i32) {
    %c0_i32 = arith.constant 0 : i32
    %c0_i32_0 = arith.constant 0 : i32
    return %c0_i32, %arg0 : i32, i32
  }
  func.func @transform_1(%arg0: i32) -> (i32, i32) {
    %c0_i32 = arith.constant 0 : i32
    %c0_i32_0 = arith.constant 0 : i32
    %c0_i32_1 = arith.constant 0 : i32
    return %c0_i32, %c0_i32_0 : i32, i32
  }
  func.func @transform_2(%arg0: i32) -> (i32, i32) {
    %c0_i32 = arith.constant 0 : i32
    %c0_i32_0 = arith.constant 0 : i32
    %c0_i32_1 = arith.constant 0 : i32
    return %c0_i32, %c0_i32_0 : i32, i32
  }
  func.func @transform_3(%arg0: i32) -> (i32, i32) {
    %c0_i32 = arith.constant 0 : i32
    %c0_i32_0 = arith.constant 0 : i32
    %c0_i32_1 = arith.constant 0 : i32
    return %c0_i32, %c0_i32_0 : i32, i32
  }
  func.func @transform_4(%arg0: i32) -> (i32, i32) {
    %c0_i32 = arith.constant 0 : i32
    %c0_i32_0 = arith.constant 0 : i32
    %c0_i32_1 = arith.constant 0 : i32
    return %c0_i32, %c0_i32_0 : i32, i32
  }
  func.func @transform_5(%arg0: i32) -> (i32, i32) {
    %c0_i32 = arith.constant 0 : i32
    %c0_i32_0 = arith.constant 0 : i32
    return %c0_i32, %arg0 : i32, i32
  }
  func.func @transform_6(%arg0: i32) -> (i32, i32) {
    %c0_i32 = arith.constant 0 : i32
    %c0_i32_0 = arith.constant 0 : i32
    return %c0_i32, %arg0 : i32, i32
  }
  func.func @transform_7(%arg0: i32) -> (i32, i32) {
    %c0_i32 = arith.constant 0 : i32
    %c0_i32_0 = arith.constant 0 : i32
    return %c0_i32, %arg0 : i32, i32
  }
}

</mosaic_0001>

<llo_original>
// kernel: _forward_first_impl.1
$region0: #{_forward_first_impl.1}
  #allocation0 [shape = 'u32[]', space=smem, size = 0x4, offset = 0x4, fixed_abs, tag = 'smem constant byte address 0x4 - core index']
  #allocation1 [shape = 'u32[144,128]{1,0:T(1,128)}', space=vmem, size = 0x12000, scoped, tag = 'internal scratch']
  %s0 = inlined_call_operand.hbm [shape: f32[1,1024], index: 0, kind: input, shape index: {}]
  %s1 = inlined_call_operand.hbm [shape: f32[5,1], index: 1, kind: input, shape index: {}]
  %s2 = inlined_call_operand.hbm [shape: f32[5,1], index: 2, kind: input, shape index: {}]
  %s3 = inlined_call_operand.hbm [shape: f32[40,5], index: 3, kind: input, shape index: {}]
  %s4 = inlined_call_operand.hbm [shape: f32[40,1], index: 4, kind: input, shape index: {}]
  %s5 = inlined_call_operand.hbm [shape: bf16[1024,40], index: 5, kind: output, shape index: {0}]
  %s6 = inlined_call_operand.hbm [shape: f32[5,1024], index: 6, kind: output, shape index: {1}]
  %s7 = inlined_call_operand.hbm [shape: f32[5,1024], index: 7, kind: output, shape index: {2}]
  %8 = xla_tuple %s5, %s6, %s7
  %s9 = sld [smem:[#allocation0]]
  $region89: #{_forward_first_impl.1} parent=0
    _
  %s11 = ssub.s32 1, %s9
  %s12 = scalar_select 0, %s11, %s9
  $region1: #{_forward_first_impl.1} parent=0
    #allocation2 [shape = 'u8[4096]{0}', space=vmem, size = 0x1000, scoped, tag = 'input window, operand 0']
    #allocation3 [shape = 's32[2]{0}', space=sflag, size = 0x8, scoped, tag = 'scoped memory for _forward_first_impl.1']
    #allocation4 [shape = 's32[2]{0}', space=sflag, size = 0x8, scoped, tag = 'scoped memory for _forward_first_impl.1']
    #allocation5 [shape = 'u8[4096]{0}', space=vmem, size = 0x1000, scoped, tag = 'input window, operand 1, single buffered']
    #allocation6 [shape = 's32[1]{0}', space=sflag, size = 0x4, scoped, tag = 'scoped memory for _forward_first_impl.1']
    #allocation7 [shape = 'u8[4096]{0}', space=vmem, size = 0x1000, scoped, tag = 'input window, operand 2, single buffered']
    #allocation8 [shape = 'u8[20480]{0}', space=vmem, size = 0x5000, scoped, tag = 'input window, operand 3, single buffered']
    #allocation9 [shape = 's32[1]{0}', space=sflag, size = 0x4, scoped, tag = 'scoped memory for _forward_first_impl.1']
    #allocation10 [shape = 'u8[20480]{0}', space=vmem, size = 0x5000, scoped, tag = 'input window, operand 4, single buffered']
    #allocation11 [shape = 'u8[262144]{0}', space=vmem, size = 0x40000, scoped, tag = 'output window, operand 0']
    #allocation12 [shape = 'u8[32768]{0}', space=vmem, size = 0x8000, scoped, tag = 'output window, operand 1']
    #allocation13 [shape = 's32[2]{0}', space=sflag, size = 0x8, scoped, tag = 'scoped memory for _forward_first_impl.1']
    #allocation14 [shape = 'u8[32768]{0}', space=vmem, size = 0x8000, scoped, tag = 'output window, operand 2']
    %13 = vsyncpa [#allocation3], 0
    %s14 = scalar_lea.sflag [#allocation3], 1
    %15 = vsyncpa %s14, 0
    %16 = vsyncpa [#allocation6], 0
    %17 = vsyncpa [#allocation9], 0
    %18 = vsyncpa [#allocation4], 0
    %s19 = scalar_lea.sflag [#allocation4], 1
    %20 = vsyncpa %s19, 0
    %21 = vsyncpa [#allocation13], 0
    %s22 = scalar_lea.sflag [#allocation13], 1
    %23 = vsyncpa %s22, 0
    loop: start=0, step=1, limit=4
    $region2: #{_forward_first_impl.1} parent=1 // loop_pre_header
      _
    $region3: #{_forward_first_impl.1} parent=1 // loop_header
      %s25 = sphi 0, %s29
      %p26 = scmp.ge.s32.totalorder %s25, 4
      %s35 = sphi 0, %s37
      %s38 = sphi 0, %s35
      %s39 = sphi 0, %s38
      %s55 = sphi 0, %s39
      %s59 = sphi 0, %s59
      %s61 = sphi 0, %s59
      %s62 = sphi 0, %s61
      %s76 = sphi 0, %s62
      %s80 = sphi 0, %s80
      %s82 = sphi 0, %s80
      %s83 = sphi 0, %s82
      %s97 = sphi 0, %s83
      %s101 = sphi 0, %s101
      %s103 = sphi 0, %s101
      %s104 = sphi 0, %s103
      %s118 = sphi 0, %s104
      %s122 = sphi 0, %s122
      %s124 = sphi 0, %s122
      %s125 = sphi 0, %s124
      %s139 = sphi 0, %s125
      %s145 = sphi 0, %s147
      %s148 = sphi 0, %s145
      %s149 = sphi 0, %s148
      %s165 = sphi 0, %s149
      %s171 = sphi 0, %s173
      %s174 = sphi 0, %s171
      %s175 = sphi 0, %s174
      %s191 = sphi 0, %s175
      %s197 = sphi 0, %s199
      %s200 = sphi 0, %s197
      %s201 = sphi 0, %s200
      %s217 = sphi 0, %s201
    $region4: #{_forward_first_impl.1} parent=1 // loop_header_branch
      %28 = sbr.rel (%p26) target = $region8
    $region5: #{_forward_first_impl.1} parent=1 // loop_body
      %s30 = ssub.s32 %s25, 1
      %s31 = ssub.s32 %s25, 2
      %s32 = sadd.s32 %s25, 1
      %s33 = ssub.s32 %s25, %s32
      %p34 = scmp.eq.s32.totalorder %s33, 0
      %s36 = sadd.s32 %s35, 1
      %s37 = scalar_select %p34, %s35, %s36
      %p40 = pneg %p34
      %p41 = scmp.eq.s32.totalorder %s25, 1
      %p42 = por %p40, %p41
      %p43 = scmp.ne.s32.totalorder %s35, %s38
      %p44 = scmp.eq.s32.totalorder %s25, 0
      %p45 = por %p43, %p44
      %p46 = scmp.ne.s32.totalorder %s35, %s38
      %p47 = scmp.eq.s32.totalorder %s30, 1
      %p48 = por %p46, %p47
      %p49 = scmp.ne.s32.totalorder %s38, %s39
      %p50 = scmp.eq.s32.totalorder %s30, 0
      %p51 = por %p49, %p50
      %p52 = scmp.ne.s32.totalorder %s38, %s39
      %p53 = scmp.eq.s32.totalorder %s31, 1
      %p54 = por %p52, %p53
      %p56 = scmp.ne.s32.totalorder %s39, %s55
      %p57 = scmp.eq.s32.totalorder %s31, 0
      %p58 = por %p56, %p57
      %s60 = sadd.s32 %s59, 1
      %p63 = scmp.eq.s32.totalorder %s25, 1
      %p64 = scmp.ne.s32.totalorder %s59, %s61
      %p65 = scmp.eq.s32.totalorder %s25, 0
      %p66 = por %p64, %p65
      %p67 = scmp.ne.s32.totalorder %s59, %s61
      %p68 = scmp.eq.s32.totalorder %s30, 1
      %p69 = por %p67, %p68
      %p70 = scmp.ne.s32.totalorder %s61, %s62
      %p71 = scmp.eq.s32.totalorder %s30, 0
      %p72 = por %p70, %p71
      %p73 = scmp.ne.s32.totalorder %s61, %s62
      %p74 = scmp.eq.s32.totalorder %s31, 1
      %p75 = por %p73, %p74
      %p77 = scmp.ne.s32.totalorder %s62, %s76
      %p78 = scmp.eq.s32.totalorder %s31, 0
      %p79 = por %p77, %p78
      %s81 = sadd.s32 %s80, 1
      %p84 = scmp.eq.s32.totalorder %s25, 1
      %p85 = scmp.ne.s32.totalorder %s80, %s82
      %p86 = scmp.eq.s32.totalorder %s25, 0
      %p87 = por %p85, %p86
      %p88 = scmp.ne.s32.totalorder %s80, %s82
      %p89 = scmp.eq.s32.totalorder %s30, 1
      %p90 = por %p88, %p89
      %p91 = scmp.ne.s32.totalorder %s82, %s83
      %p92 = scmp.eq.s32.totalorder %s30, 0
      %p93 = por %p91, %p92
      %p94 = scmp.ne.s32.totalorder %s82, %s83
      %p95 = scmp.eq.s32.totalorder %s31, 1
      %p96 = por %p94, %p95
      %p98 = scmp.ne.s32.totalorder %s83, %s97
      %p99 = scmp.eq.s32.totalorder %s31, 0
      %p100 = por %p98, %p99
      %s102 = sadd.s32 %s101, 1
      %p105 = scmp.eq.s32.totalorder %s25, 1
      %p106 = scmp.ne.s32.totalorder %s101, %s103
      %p107 = scmp.eq.s32.totalorder %s25, 0
      %p108 = por %p106, %p107
      %p109 = scmp.ne.s32.totalorder %s101, %s103
      %p110 = scmp.eq.s32.totalorder %s30, 1
      %p111 = por %p109, %p110
      %p112 = scmp.ne.s32.totalorder %s103, %s104
      %p113 = scmp.eq.s32.totalorder %s30, 0
      %p114 = por %p112, %p113
      %p115 = scmp.ne.s32.totalorder %s103, %s104
      %p116 = scmp.eq.s32.totalorder %s31, 1
      %p117 = por %p115, %p116
      %p119 = scmp.ne.s32.totalorder %s104, %s118
      %p120 = scmp.eq.s32.totalorder %s31, 0
      %p121 = por %p119, %p120
      %s123 = sadd.s32 %s122, 1
      %p126 = scmp.eq.s32.totalorder %s25, 1
      %p127 = scmp.ne.s32.totalorder %s122, %s124
      %p128 = scmp.eq.s32.totalorder %s25, 0
      %p129 = por %p127, %p128
      %p130 = scmp.ne.s32.totalorder %s122, %s124
      %p131 = scmp.eq.s32.totalorder %s30, 1
      %p132 = por %p130, %p131
      %p133 = scmp.ne.s32.totalorder %s124, %s125
      %p134 = scmp.eq.s32.totalorder %s30, 0
      %p135 = por %p133, %p134
      %p136 = scmp.ne.s32.totalorder %s124, %s125
      %p137 = scmp.eq.s32.totalorder %s31, 1
      %p138 = por %p136, %p137
      %p140 = scmp.ne.s32.totalorder %s125, %s139
      %p141 = scmp.eq.s32.totalorder %s31, 0
      %p142 = por %p140, %p141
      %s143 = ssub.s32 %s25, %s32
      %p144 = scmp.eq.s32.totalorder %s143, 0
      %s146 = sadd.s32 %s145, 1
      %s147 = scalar_select %p144, %s145, %s146
      %p150 = pneg %p144
      %p151 = scmp.eq.s32.totalorder %s25, 1
      %p152 = por %p150, %p151
      %p153 = scmp.ne.s32.totalorder %s145, %s148
      %p154 = scmp.eq.s32.totalorder %s25, 0
      %p155 = por %p153, %p154
      %p156 = scmp.ne.s32.totalorder %s145, %s148
      %p157 = scmp.eq.s32.totalorder %s30, 1
      %p158 = por %p156, %p157
      %p159 = scmp.ne.s32.totalorder %s148, %s149
      %p160 = scmp.eq.s32.totalorder %s30, 0
      %p161 = por %p159, %p160
      %p162 = scmp.ne.s32.totalorder %s148, %s149
      %p163 = scmp.eq.s32.totalorder %s31, 1
      %p164 = por %p162, %p163
      %p166 = scmp.ne.s32.totalorder %s149, %s165
      %p167 = scmp.eq.s32.totalorder %s31, 0
      %p168 = por %p166, %p167
      %s169 = ssub.s32 %s25, %s32
      %p170 = scmp.eq.s32.totalorder %s169, 0
      %s172 = sadd.s32 %s171, 1
      %s173 = scalar_select %p170, %s171, %s172
      %p176 = pneg %p170
      %p177 = scmp.eq.s32.totalorder %s25, 1
      %p178 = por %p176, %p177
      %p179 = scmp.ne.s32.totalorder %s171, %s174
      %p180 = scmp.eq.s32.totalorder %s25, 0
      %p181 = por %p179, %p180
      %p182 = scmp.ne.s32.totalorder %s171, %s174
      %p183 = scmp.eq.s32.totalorder %s30, 1
      %p184 = por %p182, %p183
      %p185 = scmp.ne.s32.totalorder %s174, %s175
      %p186 = scmp.eq.s32.totalorder %s30, 0
      %p187 = por %p185, %p186
      %p188 = scmp.ne.s32.totalorder %s174, %s175
      %p189 = scmp.eq.s32.totalorder %s31, 1
      %p190 = por %p188, %p189
      %p192 = scmp.ne.s32.totalorder %s175, %s191
      %p193 = scmp.eq.s32.totalorder %s31, 0
      %p194 = por %p192, %p193
      %s195 = ssub.s32 %s25, %s32
      %p196 = scmp.eq.s32.totalorder %s195, 0
      %s198 = sadd.s32 %s197, 1
      %s199 = scalar_select %p196, %s197, %s198
      %p202 = pneg %p196
      %p203 = scmp.eq.s32.totalorder %s25, 1
      %p204 = por %p202, %p203
      %p205 = scmp.ne.s32.totalorder %s197, %s200
      %p206 = scmp.eq.s32.totalorder %s25, 0
      %p207 = por %p205, %p206
      %p208 = scmp.ne.s32.totalorder %s197, %s200
      %p209 = scmp.eq.s32.totalorder %s30, 1
      %p210 = por %p208, %p209
      %p211 = scmp.ne.s32.totalorder %s200, %s201
      %p212 = scmp.eq.s32.totalorder %s30, 0
      %p213 = por %p211, %p212
      %p214 = scmp.ne.s32.totalorder %s200, %s201
      %p215 = scmp.eq.s32.totalorder %s31, 1
      %p216 = por %p214, %p215
      %p218 = scmp.ne.s32.totalorder %s201, %s217
      %p219 = scmp.eq.s32.totalorder %s31, 0
      %p220 = por %p218, %p219
      %p221 = scmp.le.s32.totalorder 1, %s25
      %p222 = scmp.lt.s32.totalorder %s25, 3
      %p223 = pnand %p221, %p222
      %p224 = pneg %p223
      // Predicated region
      $region9: #{_forward_first_impl.1} parent=5 // pred_check
        _
      $region10: #{_forward_first_impl.1} parent=5 // pred_check_branch
        %226 = sbr.rel (%p223) target = $region12
      $region11: #{_forward_first_impl.1} parent=5 // pred_region
        %s227 = ssub.s32 %s25, 1
        // Predicated region
        $region13: #{_forward_first_impl.1} parent=11 // pred_check
          %p228 = pneg %p72
        $region14: #{_forward_first_impl.1} parent=11 // pred_check_branch
          %230 = sbr.rel (%p228) target = $region16
        $region15: #{_forward_first_impl.1} parent=11 // pred_region
          %s232 = ssub.s32 128, 128
          %233 = vsyncadd [#allocation6], %s232
          %s235 = sshll.u32 [#allocation5], 4
          %s236 = int_to_ptr.vmem [resolvable:$true] %s235
          %238 = dma.hbm_to_vmem [thread:$0]  %s1, 128, %s236, [#allocation6]
        $region16: #{_forward_first_impl.1} parent=11 // pred_fallthru
          _
        // Predicated region
        $region17: #{_forward_first_impl.1} parent=11 // pred_check
          %p239 = pneg %p93
        $region18: #{_forward_first_impl.1} parent=11 // pred_check_branch
          %241 = sbr.rel (%p239) target = $region20
        $region19: #{_forward_first_impl.1} parent=11 // pred_region
          %s243 = ssub.s32 128, 128
          %244 = vsyncadd [#allocation6], %s243
          %s246 = sshll.u32 [#allocation7], 4
          %s247 = int_to_ptr.vmem [resolvable:$true] %s246
          %249 = dma.hbm_to_vmem [thread:$0]  %s2, 128, %s247, [#allocation6]
        $region20: #{_forward_first_impl.1} parent=11 // pred_fallthru
          _
        // Predicated region
        $region21: #{_forward_first_impl.1} parent=11 // pred_check
          %p250 = pneg %p114
        $region22: #{_forward_first_impl.1} parent=11 // pred_check_branch
          %252 = sbr.rel (%p250) target = $region24
        $region23: #{_forward_first_impl.1} parent=11 // pred_region
          %s254 = ssub.s32 640, 640
          %255 = vsyncadd [#allocation9], %s254
          %s256 = sshll.u32 [#allocation8], 4
          %s257 = int_to_ptr.vmem [resolvable:$true] %s256
          %262 = dma.hbm_to_vmem [thread:$0]  %s3, 640, %s257, [#allocation9], 128, 128, 8
        $region24: #{_forward_first_impl.1} parent=11 // pred_fallthru
          _
        // Predicated region
        $region25: #{_forward_first_impl.1} parent=11 // pred_check
          %p263 = pneg %p135
        $region26: #{_forward_first_impl.1} parent=11 // pred_check_branch
          %265 = sbr.rel (%p263) target = $region28
        $region27: #{_forward_first_impl.1} parent=11 // pred_region
          %s267 = ssub.s32 640, 640
          %268 = vsyncadd [#allocation9], %s267
          %s269 = sshll.u32 [#allocation10], 4
          %s270 = int_to_ptr.vmem [resolvable:$true] %s269
          %275 = dma.hbm_to_vmem [thread:$0]  %s4, 640, %s270, [#allocation9], 128, 128, 8
        $region28: #{_forward_first_impl.1} parent=11 // pred_fallthru
          _
      $region12: #{_forward_first_impl.1} parent=5 // pred_fallthru
        _
      %p276 = scmp.lt.s32.totalorder %s25, 2
      // Predicated region
      $region29: #{_forward_first_impl.1} parent=5 // pred_check
        %p277 = pneg %p276
      $region30: #{_forward_first_impl.1} parent=5 // pred_check_branch
        %279 = sbr.rel (%p277) target = $region32
      $region31: #{_forward_first_impl.1} parent=5 // pred_region
        // Predicated region
        $region33: #{_forward_first_impl.1} parent=31 // pred_check
          %p280 = pneg %p45
        $region34: #{_forward_first_impl.1} parent=31 // pred_check_branch
          %282 = sbr.rel (%p280) target = $region36
        $region35: #{_forward_first_impl.1} parent=31 // pred_region
          %s283 = sand.u32 %s35, 1
          %s284 = scalar_lea.sflag [#allocation3], %s283
          %s285 = sand.u32 %s35, 1
          %s286 = smul.addr %s285, 4
          %s287 = scalar_lea.vmem [#allocation2], %s286
          %s288 = smul.u32 4, %s25
          %s290 = ssub.s32 64, 64
          %291 = vsyncadd %s284, %s290
          %s292 = smul.addr %s288, 16
          %s293 = scalar_lea.hbm %s0, %s292
          %s295 = sshll.u32 %s287, 4
          %s296 = int_to_ptr.vmem [resolvable:$true] %s295
          %298 = dma.hbm_to_vmem [thread:$0]  %s293, 64, %s296, %s284
        $region36: #{_forward_first_impl.1} parent=31 // pred_fallthru
          _
      $region32: #{_forward_first_impl.1} parent=5 // pred_fallthru
        _
      %p299 = scmp.le.s32.totalorder 1, %s25
      %p300 = scmp.lt.s32.totalorder %s25, 3
      %p301 = pnand %p299, %p300
      %p302 = pneg %p301
      // Predicated region
      $region37: #{_forward_first_impl.1} parent=5 // pred_check
        _
      $region38: #{_forward_first_impl.1} parent=5 // pred_check_branch
        %304 = sbr.rel (%p301) target = $region40
      $region39: #{_forward_first_impl.1} parent=5 // pred_region
        %s305 = ssub.s32 %s25, 1
        %s306 = sand.u32 %s38, 1
        %s307 = scalar_lea.sflag [#allocation3], %s306
        %s308 = sand.u32 %s38, 1
        %s309 = smul.addr %s308, 4
        %s310 = scalar_lea.vmem [#allocation2], %s309
        // Predicated region
        $region41: #{_forward_first_impl.1} parent=39 // pred_check
          %p311 = pneg %p51
        $region42: #{_forward_first_impl.1} parent=39 // pred_check_branch
          %313 = sbr.rel (%p311) target = $region44
        $region43: #{_forward_first_impl.1} parent=39 // pred_region
          %314 = dma.done %s307, 64
        $region44: #{_forward_first_impl.1} parent=39 // pred_fallthru
          _
        // Predicated region
        $region45: #{_forward_first_impl.1} parent=39 // pred_check
          %p315 = pneg %p72
        $region46: #{_forward_first_impl.1} parent=39 // pred_check_branch
          %317 = sbr.rel (%p315) target = $region48
        $region47: #{_forward_first_impl.1} parent=39 // pred_region
          %318 = dma.done [#allocation6], 128
        $region48: #{_forward_first_impl.1} parent=39 // pred_fallthru
          _
        // Predicated region
        $region49: #{_forward_first_impl.1} parent=39 // pred_check
          %p319 = pneg %p93
        $region50: #{_forward_first_impl.1} parent=39 // pred_check_branch
          %321 = sbr.rel (%p319) target = $region52
        $region51: #{_forward_first_impl.1} parent=39 // pred_region
          %322 = dma.done [#allocation6], 128
        $region52: #{_forward_first_impl.1} parent=39 // pred_fallthru
          _
        // Predicated region
        $region53: #{_forward_first_impl.1} parent=39 // pred_check
          %p323 = pneg %p114
        $region54: #{_forward_first_impl.1} parent=39 // pred_check_branch
          %325 = sbr.rel (%p323) target = $region56
        $region55: #{_forward_first_impl.1} parent=39 // pred_region
          %326 = dma.done [#allocation9], 640
        $region56: #{_forward_first_impl.1} parent=39 // pred_fallthru
          _
        // Predicated region
        $region57: #{_forward_first_impl.1} parent=39 // pred_check
          %p327 = pneg %p135
        $region58: #{_forward_first_impl.1} parent=39 // pred_check_branch
          %329 = sbr.rel (%p327) target = $region60
        $region59: #{_forward_first_impl.1} parent=39 // pred_region
          %330 = dma.done [#allocation9], 640
        $region60: #{_forward_first_impl.1} parent=39 // pred_fallthru
          _
        %s331 = sand.u32 %s38, 1
        %s332 = scalar_lea.sflag [#allocation3], %s331
        %s333 = sand.u32 %s38, 1
        %s334 = smul.addr %s333, 4
        %s335 = scalar_lea.vmem [#allocation2], %s334
        %p336 = pneg %p51
        %p337 = pneg %p48
        %p338 = pneg %p72
        %p339 = pneg %p69
        %p340 = pneg %p93
        %p341 = pneg %p90
        %p342 = pneg %p114
        %p343 = pneg %p111
        %p344 = pneg %p135
        %p345 = pneg %p132
        %p346 = pneg %p161
        %p347 = pneg %p158
        %s348 = sand.u32 %s148, 1
        %s349 = scalar_lea.sflag [#allocation4], %s348
        %s350 = sand.u32 %s148, 1
        %s351 = smul.addr %s350, 256
        %s352 = scalar_lea.vmem [#allocation11], %s351
        %p353 = pneg %p187
        %p354 = pneg %p184
        %s355 = sand.u32 %s30, 1
        %s356 = scalar_lea.sflag [#allocation13], %s355
        %s357 = sand.u32 %s174, 1
        %s358 = smul.addr %s357, 32
        %s359 = scalar_lea.vmem [#allocation12], %s358
        %p360 = pneg %p213
        %p361 = pneg %p210
        %s362 = sand.u32 %s30, 1
        %s363 = scalar_lea.sflag [#allocation13], %s362
        %s364 = sand.u32 %s200, 1
        %s365 = smul.addr %s364, 32
        %s366 = scalar_lea.vmem [#allocation14], %s365
        %s367 = smul.u32 4, %s30
        %s368 = smul.u32 64, %s30
        %s369 = smul.u32 4, %s30
        %s370 = smul.u32 4, %s30
        %v371 = vld [vmem:[%s310] sm:$0xf]
        %v373 = vlaneseq
        %v374 = vshrl.u32 %v373, 7
        %v375 = vsub.s32 0, %v374
        %v376 = vrot.slane %v371, %v375
        %v377 = vlaneseq
        %v378 = vshrl.u32 %v377, 7
        %v379 = vsub.s32 1, %v378
        %v380 = vrot.slane %v371, %v379
        %v381 = vlaneseq
        %v382 = vshrl.u32 %v381, 7
        %v383 = vsub.s32 2, %v382
        %v384 = vrot.slane %v371, %v383
        %v385 = vlaneseq
        %v386 = vshrl.u32 %v385, 7
        %v387 = vsub.s32 3, %v386
        %v388 = vrot.slane %v371, %v387
        %v393 = vmul.f32 %v371, %v371
        %v395 = vlaneseq
        %v396 = vshrl.u32 %v395, 7
        %v397 = vsub.s32 0, %v396
        %v398 = vrot.slane %v393, %v397
        %v399 = vlaneseq
        %v400 = vshrl.u32 %v399, 7
        %v401 = vsub.s32 1, %v400
        %v402 = vrot.slane %v393, %v401
        %v403 = vlaneseq
        %v404 = vshrl.u32 %v403, 7
        %v405 = vsub.s32 2, %v404
        %v406 = vrot.slane %v393, %v405
        %v407 = vlaneseq
        %v408 = vshrl.u32 %v407, 7
        %v409 = vsub.s32 3, %v408
        %v410 = vrot.slane %v393, %v409
        %415 = vst [vmem:[%s359] sm:$0x1f] %v376
        %416 = vst [vmem:[%s359 + $0x8] sm:$0x1f] %v380
        %417 = vst [vmem:[%s359 + $0x10] sm:$0x1f] %v384
        %418 = vst [vmem:[%s359 + $0x18] sm:$0x1f] %v388
        %419 = vst [vmem:[%s366] sm:$0x1f] %v398
        %420 = vst [vmem:[%s366 + $0x8] sm:$0x1f] %v402
        %421 = vst [vmem:[%s366 + $0x10] sm:$0x1f] %v406
        %422 = vst [vmem:[%s366 + $0x18] sm:$0x1f] %v410
        %v423 = vld [vmem:[#allocation5] sm:$0x1f]
        %v424 = vld [vmem:[#allocation7] sm:$0x1f]
        %v425 = vld [vmem:[#allocation8] sm:$0xff]
        %v426 = vld [vmem:[#allocation8 + $0x8] sm:$0xff]
        %v427 = vld [vmem:[#allocation8 + $0x10] sm:$0xff]
        %v428 = vld [vmem:[#allocation8 + $0x18] sm:$0xff]
        %v429 = vld [vmem:[#allocation8 + $0x20] sm:$0xff]
        %v430 = vld [vmem:[#allocation10] sm:$0xff]
        %v431 = vld [vmem:[#allocation10 + $0x8] sm:$0xff]
        %v432 = vld [vmem:[#allocation10 + $0x10] sm:$0xff]
        %v433 = vld [vmem:[#allocation10 + $0x18] sm:$0xff]
        %v434 = vld [vmem:[#allocation10 + $0x20] sm:$0xff]
        %436 = vset.pattern.permute.xlu0 0
        %437 = vperm.xlu0 %436, %v423
        %v438 = vpop.permute.xlu0 %437
        %v440 = vmul.f32 %v376, %v438
        %v441 = vmul.f32 %v380, %v438
        %v442 = vmul.f32 %v384, %v438
        %v443 = vmul.f32 %v388, %v438
        %445 = vset.pattern.permute.xlu0 0
        %446 = vperm.xlu0 %445, %v424
        %v447 = vpop.permute.xlu0 %446
        %v449 = vmul.f32 %v398, %v447
        %v450 = vmul.f32 %v402, %v447
        %v451 = vmul.f32 %v406, %v447
        %v452 = vmul.f32 %v410, %v447
        %v453 = vrsqrt.pop %v449
        %v454 = vmul.f32 %v449, %v453
        %vm455 = vcmp.eq.f32.partialorder %v449, inf
        %v456 = vsel %vm455, %v449, %v454
        %vm457 = vcmp.eq.f32.partialorder %v449, 0.0
        %v458 = vand.u32 %v449, 2147483648
        %v459 = vsel %vm457, %v458, %v456
        %v460 = vrsqrt.pop %v450
        %v461 = vmul.f32 %v450, %v460
        %vm462 = vcmp.eq.f32.partialorder %v450, inf
        %v463 = vsel %vm462, %v450, %v461
        %vm464 = vcmp.eq.f32.partialorder %v450, 0.0
        %v465 = vand.u32 %v450, 2147483648
        %v466 = vsel %vm464, %v465, %v463
        %v467 = vrsqrt.pop %v451
        %v468 = vmul.f32 %v451, %v467
        %vm469 = vcmp.eq.f32.partialorder %v451, inf
        %v470 = vsel %vm469, %v451, %v468
        %vm471 = vcmp.eq.f32.partialorder %v451, 0.0
        %v472 = vand.u32 %v451, 2147483648
        %v473 = vsel %vm471, %v472, %v470
        %v474 = vrsqrt.pop %v452
        %v475 = vmul.f32 %v452, %v474
        %vm476 = vcmp.eq.f32.partialorder %v452, inf
        %v477 = vsel %vm476, %v452, %v475
        %vm478 = vcmp.eq.f32.partialorder %v452, 0.0
        %v479 = vand.u32 %v452, 2147483648
        %v480 = vsel %vm478, %v479, %v477
        %v481 = vadd.f32 %v459, 1e-09
        %v482 = vadd.f32 %v466, 1e-09
        %v483 = vadd.f32 %v473, 1e-09
        %v484 = vadd.f32 %v480, 1e-09
        %v485 = vrcp.pop %v481
        %v486 = vrcp.pop %v482
        %v487 = vrcp.pop %v483
        %v488 = vrcp.pop %v484
        %v489 = vmul.f32 %v440, %v485
        %v490 = vmul.f32 %v441, %v486
        %v491 = vmul.f32 %v442, %v487
        %v492 = vmul.f32 %v443, %v488
        %494 = vset.pattern.permute.xlu0 0
        %495 = vperm.xlu0 %494, %v430
        %v496 = vpop.permute.xlu0 %495
        %499 = vset.pattern.permute.xlu0 0
        %500 = vperm.xlu0 %499, %v431
        %v501 = vpop.permute.xlu0 %500
        %504 = vset.pattern.permute.xlu0 0
        %505 = vperm.xlu0 %504, %v432
        %v506 = vpop.permute.xlu0 %505
        %509 = vset.pattern.permute.xlu0 0
        %510 = vperm.xlu0 %509, %v433
        %v511 = vpop.permute.xlu0 %510
        %514 = vset.pattern.permute.xlu0 0
        %515 = vperm.xlu0 %514, %v434
        %v516 = vpop.permute.xlu0 %515
        %vm518 = vcmask 39936
        %v520 = vsel %vm518, %v425, 0
        %v523 = vsel %vm518, %v426, 0
        %v526 = vsel %vm518, %v427, 0
        %v529 = vsel %vm518, %v428, 0
        %v532 = vsel %vm518, %v429, 0
        %vm534 = vcmask 1044480
        %v536 = vsel %vm534, %v489, 0
        %v539 = vsel %vm534, %v490, 0
        %v542 = vsel %vm534, %v491, 0
        %v545 = vsel %vm534, %v492, 0
        %547 = vmatprep.subr.mxu0 %v539
        %548 = vmatpush1.msra.mxu0 %v536
        %549 = vmatprep.subr.mxu0 0.0
        %550 = vmatpush1.msra.mxu0 0.0
        %551 = vmatprep.subr.mxu0 0.0
        %552 = vmatpush1.msra.mxu0 0.0
        %553 = vmatprep.subr.mxu0 0.0
        %554 = vmatpush1.msra.mxu0 0.0
        %555 = vmatprep.subr.mxu0 0.0
        %556 = vmatpush1.msra.mxu0 0.0
        %557 = vmatprep.subr.mxu0 0.0
        %558 = vmatpush1.msra.mxu0 0.0
        %559 = vmatprep.subr.mxu0 0.0
        %560 = vmatpush1.msra.mxu0 0.0
        %561 = vmatprep.subr.mxu0 0.0
        %562 = vmatpush1.msra.mxu0 0.0
        %563 = vmatprep.subr.mxu0 0.0
        %564 = vmatpush1.msra.mxu0 0.0
        %565 = vmatprep.subr.mxu0 0.0
        %566 = vmatpush1.msra.mxu0 0.0
        %567 = vmatprep.subr.mxu0 0.0
        %568 = vmatpush1.msra.mxu0 0.0
        %569 = vmatprep.subr.mxu0 0.0
        %570 = vmatpush1.msra.mxu0 0.0
        %571 = vmatprep.subr.mxu0 0.0
        %572 = vmatpush1.msra.mxu0 0.0
        %573 = vmatprep.subr.mxu0 0.0
        %574 = vmatpush1.msra.mxu0 0.0
        %575 = vmatprep.subr.mxu0 0.0
        %576 = vmatpush1.msra.mxu0 0.0
        %577 = vmatprep.subr.mxu0 0.0
        %578 = vmatpush1.msra.mxu0 0.0
        %579 = vmatprep.subr.mxu0 0.0
        %580 = vmatpush1.msra.mxu0 0.0
        %581 = vmatprep.subr.mxu0 0.0
        %582 = vmatpush1.msra.mxu0 0.0
        %583 = vmatprep.subr.mxu0 0.0
        %584 = vmatpush1.msra.mxu0 0.0
        %585 = vmatprep.subr.mxu0 0.0
        %586 = vmatpush1.msra.mxu0 0.0
        %587 = vmatprep.subr.mxu0 0.0
        %588 = vmatpush1.msra.mxu0 0.0
        %589 = vmatprep.subr.mxu0 0.0
        %590 = vmatpush1.msra.mxu0 0.0
        %591 = vmatprep.subr.mxu0 0.0
        %592 = vmatpush1.msra.mxu0 0.0
        %593 = vmatprep.subr.mxu0 0.0
        %594 = vmatpush1.msra.mxu0 0.0
        %595 = vmatprep.subr.mxu0 0.0
        %596 = vmatpush1.msra.mxu0 0.0
        %597 = vmatprep.subr.mxu0 0.0
        %598 = vmatpush1.msra.mxu0 0.0
        %599 = vmatprep.subr.mxu0 0.0
        %600 = vmatpush1.msra.mxu0 0.0
        %601 = vmatprep.subr.mxu0 0.0
        %602 = vmatpush1.msra.mxu0 0.0
        %603 = vmatprep.subr.mxu0 0.0
        %604 = vmatpush1.msra.mxu0 0.0
        %605 = vmatprep.subr.mxu0 0.0
        %606 = vmatpush1.msra.mxu0 0.0
        %607 = vmatprep.subr.mxu0 0.0
        %608 = vmatpush1.msra.mxu0 0.0
        %609 = vmatprep.subr.mxu0 0.0
        %610 = vmatpush1.msra.mxu0 0.0
        %611 = vmatprep.mubr.f32.mxu0 0.0
        %612 = vmatmul.mubr.f32.gmra.mrb[0].mxu0 %v520
        %v613 = vpop.f32.mrb[0].mxu0
        %v614 = vadd.f32 %v496, %v613
        %v615 = vpop.f32.mrb[0].mxu0
        %v616 = vadd.f32 %v496, %v615
        %617 = vmatprep.mubr.f32.mxu0 0.0
        %618 = vmatmul.mubr.f32.gmra.mrb[0].mxu0 %v523
        %v619 = vpop.f32.mrb[0].mxu0
        %v620 = vadd.f32 %v501, %v619
        %v621 = vpop.f32.mrb[0].mxu0
        %v622 = vadd.f32 %v501, %v621
        %623 = vmatprep.mubr.f32.mxu0 0.0
        %624 = vmatmul.mubr.f32.gmra.mrb[0].mxu0 %v526
        %v625 = vpop.f32.mrb[0].mxu0
        %v626 = vadd.f32 %v506, %v625
        %v627 = vpop.f32.mrb[0].mxu0
        %v628 = vadd.f32 %v506, %v627
        %629 = vmatprep.mubr.f32.mxu0 0.0
        %630 = vmatmul.mubr.f32.gmra.mrb[0].mxu0 %v529
        %v631 = vpop.f32.mrb[0].mxu0
        %v632 = vadd.f32 %v511, %v631
        %v633 = vpop.f32.mrb[0].mxu0
        %v634 = vadd.f32 %v511, %v633
        %635 = vmatprep.mubr.f32.mxu0 0.0
        %636 = vmatmul.mubr.f32.gmra.mrb[0].mxu0 %v532
        %v637 = vpop.f32.mrb[0].mxu0
        %v638 = vadd.f32 %v516, %v637
        %v639 = vpop.f32.mrb[0].mxu0
        %v640 = vadd.f32 %v516, %v639
        %641 = vdwg.mxu0
        %642 = vmatprep.subr.mxu0 %v545
        %643 = vmatpush1.msra.mxu0 %v542
        %644 = vmatprep.subr.mxu0 0.0
        %645 = vmatpush1.msra.mxu0 0.0
        %646 = vmatprep.subr.mxu0 0.0
        %647 = vmatpush1.msra.mxu0 0.0
        %648 = vmatprep.subr.mxu0 0.0
        %649 = vmatpush1.msra.mxu0 0.0
        %650 = vmatprep.subr.mxu0 0.0
        %651 = vmatpush1.msra.mxu0 0.0
        %652 = vmatprep.subr.mxu0 0.0
        %653 = vmatpush1.msra.mxu0 0.0
        %654 = vmatprep.subr.mxu0 0.0
        %655 = vmatpush1.msra.mxu0 0.0
        %656 = vmatprep.subr.mxu0 0.0
        %657 = vmatpush1.msra.mxu0 0.0
        %658 = vmatprep.subr.mxu0 0.0
        %659 = vmatpush1.msra.mxu0 0.0
        %660 = vmatprep.subr.mxu0 0.0
        %661 = vmatpush1.msra.mxu0 0.0
        %662 = vmatprep.subr.mxu0 0.0
        %663 = vmatpush1.msra.mxu0 0.0
        %664 = vmatprep.subr.mxu0 0.0
        %665 = vmatpush1.msra.mxu0 0.0
        %666 = vmatprep.subr.mxu0 0.0
        %667 = vmatpush1.msra.mxu0 0.0
        %668 = vmatprep.subr.mxu0 0.0
        %669 = vmatpush1.msra.mxu0 0.0
        %670 = vmatprep.subr.mxu0 0.0
        %671 = vmatpush1.msra.mxu0 0.0
        %672 = vmatprep.subr.mxu0 0.0
        %673 = vmatpush1.msra.mxu0 0.0
        %674 = vmatprep.subr.mxu0 0.0
        %675 = vmatpush1.msra.mxu0 0.0
        %676 = vmatprep.subr.mxu0 0.0
        %677 = vmatpush1.msra.mxu0 0.0
        %678 = vmatprep.subr.mxu0 0.0
        %679 = vmatpush1.msra.mxu0 0.0
        %680 = vmatprep.subr.mxu0 0.0
        %681 = vmatpush1.msra.mxu0 0.0
        %682 = vmatprep.subr.mxu0 0.0
        %683 = vmatpush1.msra.mxu0 0.0
        %684 = vmatprep.subr.mxu0 0.0
        %685 = vmatpush1.msra.mxu0 0.0
        %686 = vmatprep.subr.mxu0 0.0
        %687 = vmatpush1.msra.mxu0 0.0
        %688 = vmatprep.subr.mxu0 0.0
        %689 = vmatpush1.msra.mxu0 0.0
        %690 = vmatprep.subr.mxu0 0.0
        %691 = vmatpush1.msra.mxu0 0.0
        %692 = vmatprep.subr.mxu0 0.0
        %693 = vmatpush1.msra.mxu0 0.0
        %694 = vmatprep.subr.mxu0 0.0
        %695 = vmatpush1.msra.mxu0 0.0
        %696 = vmatprep.subr.mxu0 0.0
        %697 = vmatpush1.msra.mxu0 0.0
        %698 = vmatprep.subr.mxu0 0.0
        %699 = vmatpush1.msra.mxu0 0.0
        %700 = vmatprep.subr.mxu0 0.0
        %701 = vmatpush1.msra.mxu0 0.0
        %702 = vmatprep.subr.mxu0 0.0
        %703 = vmatpush1.msra.mxu0 0.0
        %704 = vmatprep.subr.mxu0 0.0
        %705 = vmatpush1.msra.mxu0 0.0
        %706 = vmatprep.mubr.f32.mxu0 0.0
        %707 = vmatmul.mubr.f32.gmra.mrb[0].mxu0 %v520
        %v708 = vpop.f32.mrb[0].mxu0
        %v709 = vadd.f32 %v496, %v708
        %v710 = vpop.f32.mrb[0].mxu0
        %v711 = vadd.f32 %v496, %v710
        %712 = vmatprep.mubr.f32.mxu0 0.0
        %713 = vmatmul.mubr.f32.gmra.mrb[0].mxu0 %v523
        %v714 = vpop.f32.mrb[0].mxu0
        %v715 = vadd.f32 %v501, %v714
        %v716 = vpop.f32.mrb[0].mxu0
        %v717 = vadd.f32 %v501, %v716
        %718 = vmatprep.mubr.f32.mxu0 0.0
        %719 = vmatmul.mubr.f32.gmra.mrb[0].mxu0 %v526
        %v720 = vpop.f32.mrb[0].mxu0
        %v721 = vadd.f32 %v506, %v720
        %v722 = vpop.f32.mrb[0].mxu0
        %v723 = vadd.f32 %v506, %v722
        %724 = vmatprep.mubr.f32.mxu0 0.0
        %725 = vmatmul.mubr.f32.gmra.mrb[0].mxu0 %v529
        %v726 = vpop.f32.mrb[0].mxu0
        %v727 = vadd.f32 %v511, %v726
        %v728 = vpop.f32.mrb[0].mxu0
        %v729 = vadd.f32 %v511, %v728
        %730 = vmatprep.mubr.f32.mxu0 0.0
        %731 = vmatmul.mubr.f32.gmra.mrb[0].mxu0 %v532
        %v732 = vpop.f32.mrb[0].mxu0
        %v733 = vadd.f32 %v516, %v732
        %v734 = vpop.f32.mrb[0].mxu0
        %v735 = vadd.f32 %v516, %v734
        %736 = vdwg.mxu0
        %v737 = vmax.f32 %v614, 0.0
        %v738 = vmax.f32 %v616, 0.0
        %v739 = vmax.f32 %v709, 0.0
        %v740 = vmax.f32 %v711, 0.0
        %v741 = vmax.f32 %v620, 0.0
        %v742 = vmax.f32 %v622, 0.0
        %v743 = vmax.f32 %v715, 0.0
        %v744 = vmax.f32 %v717, 0.0
        %v745 = vmax.f32 %v626, 0.0
        %v746 = vmax.f32 %v628, 0.0
        %v747 = vmax.f32 %v721, 0.0
        %v748 = vmax.f32 %v723, 0.0
        %v749 = vmax.f32 %v632, 0.0
        %v750 = vmax.f32 %v634, 0.0
        %v751 = vmax.f32 %v727, 0.0
        %v752 = vmax.f32 %v729, 0.0
        %v753 = vmax.f32 %v638, 0.0
        %v754 = vmax.f32 %v640, 0.0
        %v755 = vmax.f32 %v733, 0.0
        %v756 = vmax.f32 %v735, 0.0
        %757 = vxpose.xlu0.b32.start [1/16] %v737, 128
        %758 = vxpose.xlu0.b32.cont [2/16] %v741, 128
        %759 = vxpose.xlu0.b32.cont [3/16] %v745, 128
        %760 = vxpose.xlu0.b32.cont [4/16] %v749, 128
        %761 = vxpose.xlu0.b32.cont [5/16] %v753, 128
        %762 = vxpose.xlu0.b32.cont [6/16] 0.0, 128
        %763 = vxpose.xlu0.b32.cont [7/16] 0.0, 128
        %764 = vxpose.xlu0.b32.cont [8/16] 0.0, 128
        %765 = vxpose.xlu0.b32.cont [9/16] 0.0, 128
        %766 = vxpose.xlu0.b32.cont [10/16] 0.0, 128
        %767 = vxpose.xlu0.b32.cont [11/16] 0.0, 128
        %768 = vxpose.xlu0.b32.cont [12/16] 0.0, 128
        %769 = vxpose.xlu0.b32.cont [13/16] 0.0, 128
        %770 = vxpose.xlu0.b32.cont [14/16] 0.0, 128
        %771 = vxpose.xlu0.b32.cont [15/16] 0.0, 128
        %772 = vxpose.xlu0.b32.end [16/16] 0.0, 128
        %v773 = vpop.trf.xlu0
        %v774 = vpop.trf.xlu0
        %v775 = vpop.trf.xlu0
        %v776 = vpop.trf.xlu0
        %v777 = vpop.trf.xlu0
        %v778 = vpop.trf.xlu0
        %v779 = vpop.trf.xlu0
        %v780 = vpop.trf.xlu0
        %v781 = vpop.trf.xlu0
        %v782 = vpop.trf.xlu0
        %v783 = vpop.trf.xlu0
        %v784 = vpop.trf.xlu0
        %v785 = vpop.trf.xlu0
        %v786 = vpop.trf.xlu0
        %v787 = vpop.trf.xlu0
        %v788 = vpop.trf.xlu0
        %789 = vxpose.xlu0.b32.start [1/16] %v738, 128
        %790 = vxpose.xlu0.b32.cont [2/16] %v742, 128
        %791 = vxpose.xlu0.b32.cont [3/16] %v746, 128
        %792 = vxpose.xlu0.b32.cont [4/16] %v750, 128
        %793 = vxpose.xlu0.b32.cont [5/16] %v754, 128
        %794 = vxpose.xlu0.b32.cont [6/16] 0.0, 128
        %795 = vxpose.xlu0.b32.cont [7/16] 0.0, 128
        %796 = vxpose.xlu0.b32.cont [8/16] 0.0, 128
        %797 = vxpose.xlu0.b32.cont [9/16] 0.0, 128
        %798 = vxpose.xlu0.b32.cont [10/16] 0.0, 128
        %799 = vxpose.xlu0.b32.cont [11/16] 0.0, 128
        %800 = vxpose.xlu0.b32.cont [12/16] 0.0, 128
        %801 = vxpose.xlu0.b32.cont [13/16] 0.0, 128
        %802 = vxpose.xlu0.b32.cont [14/16] 0.0, 128
        %803 = vxpose.xlu0.b32.cont [15/16] 0.0, 128
        %804 = vxpose.xlu0.b32.end [16/16] 0.0, 128
        %v805 = vpop.trf.xlu0
        %v806 = vpop.trf.xlu0
        %v807 = vpop.trf.xlu0
        %v808 = vpop.trf.xlu0
        %v809 = vpop.trf.xlu0
        %v810 = vpop.trf.xlu0
        %v811 = vpop.trf.xlu0
        %v812 = vpop.trf.xlu0
        %v813 = vpop.trf.xlu0
        %v814 = vpop.trf.xlu0
        %v815 = vpop.trf.xlu0
        %v816 = vpop.trf.xlu0
        %v817 = vpop.trf.xlu0
        %v818 = vpop.trf.xlu0
        %v819 = vpop.trf.xlu0
        %v820 = vpop.trf.xlu0
        %821 = vxpose.xlu0.b32.start [1/16] %v739, 128
        %822 = vxpose.xlu0.b32.cont [2/16] %v743, 128
        %823 = vxpose.xlu0.b32.cont [3/16] %v747, 128
        %824 = vxpose.xlu0.b32.cont [4/16] %v751, 128
        %825 = vxpose.xlu0.b32.cont [5/16] %v755, 128
        %826 = vxpose.xlu0.b32.cont [6/16] 0.0, 128
        %827 = vxpose.xlu0.b32.cont [7/16] 0.0, 128
        %828 = vxpose.xlu0.b32.cont [8/16] 0.0, 128
        %829 = vxpose.xlu0.b32.cont [9/16] 0.0, 128
        %830 = vxpose.xlu0.b32.cont [10/16] 0.0, 128
        %831 = vxpose.xlu0.b32.cont [11/16] 0.0, 128
        %832 = vxpose.xlu0.b32.cont [12/16] 0.0, 128
        %833 = vxpose.xlu0.b32.cont [13/16] 0.0, 128
        %834 = vxpose.xlu0.b32.cont [14/16] 0.0, 128
        %835 = vxpose.xlu0.b32.cont [15/16] 0.0, 128
        %836 = vxpose.xlu0.b32.end [16/16] 0.0, 128
        %v837 = vpop.trf.xlu0
        %v838 = vpop.trf.xlu0
        %v839 = vpop.trf.xlu0
        %v840 = vpop.trf.xlu0
        %v841 = vpop.trf.xlu0
        %v842 = vpop.trf.xlu0
        %v843 = vpop.trf.xlu0
        %v844 = vpop.trf.xlu0
        %v845 = vpop.trf.xlu0
        %v846 = vpop.trf.xlu0
        %v847 = vpop.trf.xlu0
        %v848 = vpop.trf.xlu0
        %v849 = vpop.trf.xlu0
        %v850 = vpop.trf.xlu0
        %v851 = vpop.trf.xlu0
        %v852 = vpop.trf.xlu0
        %853 = vxpose.xlu0.b32.start [1/16] %v740, 128
        %854 = vxpose.xlu0.b32.cont [2/16] %v744, 128
        %855 = vxpose.xlu0.b32.cont [3/16] %v748, 128
        %856 = vxpose.xlu0.b32.cont [4/16] %v752, 128
        %857 = vxpose.xlu0.b32.cont [5/16] %v756, 128
        %858 = vxpose.xlu0.b32.cont [6/16] 0.0, 128
        %859 = vxpose.xlu0.b32.cont [7/16] 0.0, 128
        %860 = vxpose.xlu0.b32.cont [8/16] 0.0, 128
        %861 = vxpose.xlu0.b32.cont [9/16] 0.0, 128
        %862 = vxpose.xlu0.b32.cont [10/16] 0.0, 128
        %863 = vxpose.xlu0.b32.cont [11/16] 0.0, 128
        %864 = vxpose.xlu0.b32.cont [12/16] 0.0, 128
        %865 = vxpose.xlu0.b32.cont [13/16] 0.0, 128
        %866 = vxpose.xlu0.b32.cont [14/16] 0.0, 128
        %867 = vxpose.xlu0.b32.cont [15/16] 0.0, 128
        %868 = vxpose.xlu0.b32.end [16/16] 0.0, 128
        %v869 = vpop.trf.xlu0
        %v870 = vpop.trf.xlu0
        %v871 = vpop.trf.xlu0
        %v872 = vpop.trf.xlu0
        %v873 = vpop.trf.xlu0
        %v874 = vpop.trf.xlu0
        %v875 = vpop.trf.xlu0
        %v876 = vpop.trf.xlu0
        %v877 = vpop.trf.xlu0
        %v878 = vpop.trf.xlu0
        %v879 = vpop.trf.xlu0
        %v880 = vpop.trf.xlu0
        %v881 = vpop.trf.xlu0
        %v882 = vpop.trf.xlu0
        %v883 = vpop.trf.xlu0
        %v884 = vpop.trf.xlu0
        %v885 = vpack.c.bf16 %v774, %v773
        %v886 = vpack.c.bf16 %v776, %v775
        %v887 = vpack.c.bf16 %v778, %v777
        %v888 = vpack.c.bf16 %v780, %v779
        %v889 = vpack.c.bf16 %v782, %v781
        %v890 = vpack.c.bf16 %v784, %v783
        %v891 = vpack.c.bf16 %v786, %v785
        %v892 = vpack.c.bf16 %v788, %v787
        %v893 = vpack.c.bf16 %v806, %v805
        %v894 = vpack.c.bf16 %v808, %v807
        %v895 = vpack.c.bf16 %v810, %v809
        %v896 = vpack.c.bf16 %v812, %v811
        %v897 = vpack.c.bf16 %v814, %v813
        %v898 = vpack.c.bf16 %v816, %v815
        %v899 = vpack.c.bf16 %v818, %v817
        %v900 = vpack.c.bf16 %v820, %v819
        %v901 = vpack.c.bf16 %v838, %v837
        %v902 = vpack.c.bf16 %v840, %v839
        %v903 = vpack.c.bf16 %v842, %v841
        %v904 = vpack.c.bf16 %v844, %v843
        %v905 = vpack.c.bf16 %v846, %v845
        %v906 = vpack.c.bf16 %v848, %v847
        %v907 = vpack.c.bf16 %v850, %v849
        %v908 = vpack.c.bf16 %v852, %v851
        %v909 = vpack.c.bf16 %v870, %v869
        %v910 = vpack.c.bf16 %v872, %v871
        %v911 = vpack.c.bf16 %v874, %v873
        %v912 = vpack.c.bf16 %v876, %v875
        %v913 = vpack.c.bf16 %v878, %v877
        %v914 = vpack.c.bf16 %v880, %v879
        %v915 = vpack.c.bf16 %v882, %v881
        %v916 = vpack.c.bf16 %v884, %v883
        %v949 = vunpack.c.l.b16 %v885
        %v950 = vunpack.c.h.b16 %v885
        %v951 = vunpack.c.l.b16 %v886
        %v952 = vunpack.c.h.b16 %v886
        %v953 = vunpack.c.l.b16 %v887
        %v954 = vunpack.c.h.b16 %v887
        %v955 = vunpack.c.l.b16 %v888
        %v956 = vunpack.c.h.b16 %v888
        %v957 = vunpack.c.l.b16 %v889
        %v958 = vunpack.c.h.b16 %v889
        %v959 = vunpack.c.l.b16 %v890
        %v960 = vunpack.c.h.b16 %v890
        %v961 = vunpack.c.l.b16 %v891
        %v962 = vunpack.c.h.b16 %v891
        %v963 = vunpack.c.l.b16 %v892
        %v964 = vunpack.c.h.b16 %v892
        %v965 = vunpack.c.l.b16 %v893
        %v966 = vunpack.c.h.b16 %v893
        %v967 = vunpack.c.l.b16 %v894
        %v968 = vunpack.c.h.b16 %v894
        %v969 = vunpack.c.l.b16 %v895
        %v970 = vunpack.c.h.b16 %v895
        %v971 = vunpack.c.l.b16 %v896
        %v972 = vunpack.c.h.b16 %v896
        %v973 = vunpack.c.l.b16 %v897
        %v974 = vunpack.c.h.b16 %v897
        %v975 = vunpack.c.l.b16 %v898
        %v976 = vunpack.c.h.b16 %v898
        %v977 = vunpack.c.l.b16 %v899
        %v978 = vunpack.c.h.b16 %v899
        %v979 = vunpack.c.l.b16 %v900
        %v980 = vunpack.c.h.b16 %v900
        %v981 = vunpack.c.l.b16 %v901
        %v982 = vunpack.c.h.b16 %v901
        %v983 = vunpack.c.l.b16 %v902
        %v984 = vunpack.c.h.b16 %v902
        %v985 = vunpack.c.l.b16 %v903
        %v986 = vunpack.c.h.b16 %v903
        %v987 = vunpack.c.l.b16 %v904
        %v988 = vunpack.c.h.b16 %v904
        %v989 = vunpack.c.l.b16 %v905
        %v990 = vunpack.c.h.b16 %v905
        %v991 = vunpack.c.l.b16 %v906
        %v992 = vunpack.c.h.b16 %v906
        %v993 = vunpack.c.l.b16 %v907
        %v994 = vunpack.c.h.b16 %v907
        %v995 = vunpack.c.l.b16 %v908
        %v996 = vunpack.c.h.b16 %v908
        %v997 = vunpack.c.l.b16 %v909
        %v998 = vunpack.c.h.b16 %v909
        %v999 = vunpack.c.l.b16 %v910
        %v1000 = vunpack.c.h.b16 %v910
        %v1001 = vunpack.c.l.b16 %v911
        %v1002 = vunpack.c.h.b16 %v911
        %v1003 = vunpack.c.l.b16 %v912
        %v1004 = vunpack.c.h.b16 %v912
        %v1005 = vunpack.c.l.b16 %v913
        %v1006 = vunpack.c.h.b16 %v913
        %v1007 = vunpack.c.l.b16 %v914
        %v1008 = vunpack.c.h.b16 %v914
        %v1009 = vunpack.c.l.b16 %v915
        %v1010 = vunpack.c.h.b16 %v915
        %v1011 = vunpack.c.l.b16 %v916
        %v1012 = vunpack.c.h.b16 %v916
        %v1013 = vpack.c.b16 %v949, %v949
        %v1014 = vpack.c.b16 %v950, %v950
        %v1015 = vpack.c.b16 %v951, %v951
        %v1016 = vpack.c.b16 %v952, %v952
        %v1017 = vpack.c.b16 %v953, %v953
        %v1018 = vpack.c.b16 %v954, %v954
        %v1019 = vpack.c.b16 %v955, %v955
        %v1020 = vpack.c.b16 %v956, %v956
        %v1021 = vpack.c.b16 %v957, %v957
        %v1022 = vpack.c.b16 %v958, %v958
        %v1023 = vpack.c.b16 %v959, %v959
        %v1024 = vpack.c.b16 %v960, %v960
        %v1025 = vpack.c.b16 %v961, %v961
        %v1026 = vpack.c.b16 %v962, %v962
        %v1027 = vpack.c.b16 %v963, %v963
        %v1028 = vpack.c.b16 %v964, %v964
        %v1029 = vpack.c.b16 %v965, %v965
        %v1030 = vpack.c.b16 %v966, %v966
        %v1031 = vpack.c.b16 %v967, %v967
        %v1032 = vpack.c.b16 %v968, %v968
        %v1033 = vpack.c.b16 %v969, %v969
        %v1034 = vpack.c.b16 %v970, %v970
        %v1035 = vpack.c.b16 %v971, %v971
        %v1036 = vpack.c.b16 %v972, %v972
        %v1037 = vpack.c.b16 %v973, %v973
        %v1038 = vpack.c.b16 %v974, %v974
        %v1039 = vpack.c.b16 %v975, %v975
        %v1040 = vpack.c.b16 %v976, %v976
        %v1041 = vpack.c.b16 %v977, %v977
        %v1042 = vpack.c.b16 %v978, %v978
        %v1043 = vpack.c.b16 %v979, %v979
        %v1044 = vpack.c.b16 %v980, %v980
        %v1045 = vpack.c.b16 %v981, %v981
        %v1046 = vpack.c.b16 %v982, %v982
        %v1047 = vpack.c.b16 %v983, %v983
        %v1048 = vpack.c.b16 %v984, %v984
        %v1049 = vpack.c.b16 %v985, %v985
        %v1050 = vpack.c.b16 %v986, %v986
        %v1051 = vpack.c.b16 %v987, %v987
        %v1052 = vpack.c.b16 %v988, %v988
        %v1053 = vpack.c.b16 %v989, %v989
        %v1054 = vpack.c.b16 %v990, %v990
        %v1055 = vpack.c.b16 %v991, %v991
        %v1056 = vpack.c.b16 %v992, %v992
        %v1057 = vpack.c.b16 %v993, %v993
        %v1058 = vpack.c.b16 %v994, %v994
        %v1059 = vpack.c.b16 %v995, %v995
        %v1060 = vpack.c.b16 %v996, %v996
        %v1061 = vpack.c.b16 %v997, %v997
        %v1062 = vpack.c.b16 %v998, %v998
        %v1063 = vpack.c.b16 %v999, %v999
        %v1064 = vpack.c.b16 %v1000, %v1000
        %v1065 = vpack.c.b16 %v1001, %v1001
        %v1066 = vpack.c.b16 %v1002, %v1002
        %v1067 = vpack.c.b16 %v1003, %v1003
        %v1068 = vpack.c.b16 %v1004, %v1004
        %v1069 = vpack.c.b16 %v1005, %v1005
        %v1070 = vpack.c.b16 %v1006, %v1006
        %v1071 = vpack.c.b16 %v1007, %v1007
        %v1072 = vpack.c.b16 %v1008, %v1008
        %v1073 = vpack.c.b16 %v1009, %v1009
        %v1074 = vpack.c.b16 %v1010, %v1010
        %v1075 = vpack.c.b16 %v1011, %v1011
        %v1076 = vpack.c.b16 %v1012, %v1012
        %vm1141 = vcmask 322560
        %1142 = vst.msk [vmem:[%s352] sm:$0xf] %vm1141, %v1013
        %1143 = vst.msk [vmem:[%s352 + $0x4] sm:$0xf] %vm1141, %v1014
        %1144 = vst.msk [vmem:[%s352 + $0x8] sm:$0xf] %vm1141, %v1015
        %1145 = vst.msk [vmem:[%s352 + $0xc] sm:$0xf] %vm1141, %v1016
        %1146 = vst.msk [vmem:[%s352 + $0x10] sm:$0xf] %vm1141, %v1017
        %1147 = vst.msk [vmem:[%s352 + $0x14] sm:$0xf] %vm1141, %v1018
        %1148 = vst.msk [vmem:[%s352 + $0x18] sm:$0xf] %vm1141, %v1019
        %1149 = vst.msk [vmem:[%s352 + $0x1c] sm:$0xf] %vm1141, %v1020
        %1150 = vst.msk [vmem:[%s352 + $0x20] sm:$0xf] %vm1141, %v1021
        %1151 = vst.msk [vmem:[%s352 + $0x24] sm:$0xf] %vm1141, %v1022
        %1152 = vst.msk [vmem:[%s352 + $0x28] sm:$0xf] %vm1141, %v1023
        %1153 = vst.msk [vmem:[%s352 + $0x2c] sm:$0xf] %vm1141, %v1024
        %1154 = vst.msk [vmem:[%s352 + $0x30] sm:$0xf] %vm1141, %v1025
        %1155 = vst.msk [vmem:[%s352 + $0x34] sm:$0xf] %vm1141, %v1026
        %1156 = vst.msk [vmem:[%s352 + $0x38] sm:$0xf] %vm1141, %v1027
        %1157 = vst.msk [vmem:[%s352 + $0x3c] sm:$0xf] %vm1141, %v1028
        %1158 = vst.msk [vmem:[%s352 + $0x40] sm:$0xf] %vm1141, %v1029
        %1159 = vst.msk [vmem:[%s352 + $0x44] sm:$0xf] %vm1141, %v1030
        %1160 = vst.msk [vmem:[%s352 + $0x48] sm:$0xf] %vm1141, %v1031
        %1161 = vst.msk [vmem:[%s352 + $0x4c] sm:$0xf] %vm1141, %v1032
        %1162 = vst.msk [vmem:[%s352 + $0x50] sm:$0xf] %vm1141, %v1033
        %1163 = vst.msk [vmem:[%s352 + $0x54] sm:$0xf] %vm1141, %v1034
        %1164 = vst.msk [vmem:[%s352 + $0x58] sm:$0xf] %vm1141, %v1035
        %1165 = vst.msk [vmem:[%s352 + $0x5c] sm:$0xf] %vm1141, %v1036
        %1166 = vst.msk [vmem:[%s352 + $0x60] sm:$0xf] %vm1141, %v1037
        %1167 = vst.msk [vmem:[%s352 + $0x64] sm:$0xf] %vm1141, %v1038
        %1168 = vst.msk [vmem:[%s352 + $0x68] sm:$0xf] %vm1141, %v1039
        %1169 = vst.msk [vmem:[%s352 + $0x6c] sm:$0xf] %vm1141, %v1040
        %1170 = vst.msk [vmem:[%s352 + $0x70] sm:$0xf] %vm1141, %v1041
        %1171 = vst.msk [vmem:[%s352 + $0x74] sm:$0xf] %vm1141, %v1042
        %1172 = vst.msk [vmem:[%s352 + $0x78] sm:$0xf] %vm1141, %v1043
        %1173 = vst.msk [vmem:[%s352 + $0x7c] sm:$0xf] %vm1141, %v1044
        %1174 = vst.msk [vmem:[%s352 + $0x80] sm:$0xf] %vm1141, %v1045
        %1175 = vst.msk [vmem:[%s352 + $0x84] sm:$0xf] %vm1141, %v1046
        %1176 = vst.msk [vmem:[%s352 + $0x88] sm:$0xf] %vm1141, %v1047
        %1177 = vst.msk [vmem:[%s352 + $0x8c] sm:$0xf] %vm1141, %v1048
        %1178 = vst.msk [vmem:[%s352 + $0x90] sm:$0xf] %vm1141, %v1049
        %1179 = vst.msk [vmem:[%s352 + $0x94] sm:$0xf] %vm1141, %v1050
        %1180 = vst.msk [vmem:[%s352 + $0x98] sm:$0xf] %vm1141, %v1051
        %1181 = vst.msk [vmem:[%s352 + $0x9c] sm:$0xf] %vm1141, %v1052
        %1182 = vst.msk [vmem:[%s352 + $0xa0] sm:$0xf] %vm1141, %v1053
        %1183 = vst.msk [vmem:[%s352 + $0xa4] sm:$0xf] %vm1141, %v1054
        %1184 = vst.msk [vmem:[%s352 + $0xa8] sm:$0xf] %vm1141, %v1055
        %1185 = vst.msk [vmem:[%s352 + $0xac] sm:$0xf] %vm1141, %v1056
        %1186 = vst.msk [vmem:[%s352 + $0xb0] sm:$0xf] %vm1141, %v1057
        %1187 = vst.msk [vmem:[%s352 + $0xb4] sm:$0xf] %vm1141, %v1058
        %1188 = vst.msk [vmem:[%s352 + $0xb8] sm:$0xf] %vm1141, %v1059
        %1189 = vst.msk [vmem:[%s352 + $0xbc] sm:$0xf] %vm1141, %v1060
        %1190 = vst.msk [vmem:[%s352 + $0xc0] sm:$0xf] %vm1141, %v1061
        %1191 = vst.msk [vmem:[%s352 + $0xc4] sm:$0xf] %vm1141, %v1062
        %1192 = vst.msk [vmem:[%s352 + $0xc8] sm:$0xf] %vm1141, %v1063
        %1193 = vst.msk [vmem:[%s352 + $0xcc] sm:$0xf] %vm1141, %v1064
        %1194 = vst.msk [vmem:[%s352 + $0xd0] sm:$0xf] %vm1141, %v1065
        %1195 = vst.msk [vmem:[%s352 + $0xd4] sm:$0xf] %vm1141, %v1066
        %1196 = vst.msk [vmem:[%s352 + $0xd8] sm:$0xf] %vm1141, %v1067
        %1197 = vst.msk [vmem:[%s352 + $0xdc] sm:$0xf] %vm1141, %v1068
        %1198 = vst.msk [vmem:[%s352 + $0xe0] sm:$0xf] %vm1141, %v1069
        %1199 = vst.msk [vmem:[%s352 + $0xe4] sm:$0xf] %vm1141, %v1070
        %1200 = vst.msk [vmem:[%s352 + $0xe8] sm:$0xf] %vm1141, %v1071
        %1201 = vst.msk [vmem:[%s352 + $0xec] sm:$0xf] %vm1141, %v1072
        %1202 = vst.msk [vmem:[%s352 + $0xf0] sm:$0xf] %vm1141, %v1073
        %1203 = vst.msk [vmem:[%s352 + $0xf4] sm:$0xf] %vm1141, %v1074
        %1204 = vst.msk [vmem:[%s352 + $0xf8] sm:$0xf] %vm1141, %v1075
        %1205 = vst.msk [vmem:[%s352 + $0xfc] sm:$0xf] %vm1141, %v1076
        %s1206 = sand.u32 %s148, 1
        %s1207 = scalar_lea.sflag [#allocation4], %s1206
        %s1208 = sand.u32 %s148, 1
        %s1209 = smul.addr %s1208, 256
        %s1210 = scalar_lea.vmem [#allocation11], %s1209
        %s1211 = sand.u32 %s30, 1
        %s1212 = scalar_lea.sflag [#allocation13], %s1211
        %s1213 = sand.u32 %s174, 1
        %s1214 = smul.addr %s1213, 32
        %s1215 = scalar_lea.vmem [#allocation12], %s1214
        %s1216 = sand.u32 %s30, 1
        %s1217 = scalar_lea.sflag [#allocation13], %s1216
        %s1218 = sand.u32 %s200, 1
        %s1219 = smul.addr %s1218, 32
        %s1220 = scalar_lea.vmem [#allocation14], %s1219
        // Predicated region
        $region61: #{_forward_first_impl.1} parent=39 // pred_check
          %p1221 = pneg %p158
        $region62: #{_forward_first_impl.1} parent=39 // pred_check_branch
          %1223 = sbr.rel (%p1221) target = $region64
        $region63: #{_forward_first_impl.1} parent=39 // pred_region
          %s1224 = smul.u32 64, %s30
          %s1226 = ssub.s32 4096, 4096
          %1227 = vsyncadd %s1207, %s1226
          %s1228 = smul.addr %s1224, 64
          %s1229 = scalar_lea.hbm %s5, %s1228
          %s1230 = sshll.u32 %s1210, 4
          %s1231 = int_to_ptr.vmem [resolvable:$true] %s1230
          %1236 = dma.vmem_to_hbm [thread:$0]  %s1231, 4096, %s1229, %s1207, 64, 64, 4
        $region64: #{_forward_first_impl.1} parent=39 // pred_fallthru
          _
        // Predicated region
        $region65: #{_forward_first_impl.1} parent=39 // pred_check
          %p1237 = pneg %p184
        $region66: #{_forward_first_impl.1} parent=39 // pred_check_branch
          %1239 = sbr.rel (%p1237) target = $region68
        $region67: #{_forward_first_impl.1} parent=39 // pred_region
          %s1240 = smul.u32 4, %s30
          %s1242 = ssub.s32 512, 512
          %1243 = vsyncadd %s1212, %s1242
          %s1244 = smul.addr %s1240, 128
          %s1245 = scalar_lea.hbm %s6, %s1244
          %s1247 = sshll.u32 %s1215, 4
          %s1248 = int_to_ptr.vmem [resolvable:$true] %s1247
          %1250 = dma.vmem_to_hbm [thread:$0]  %s1248, 512, %s1245, %s1212
        $region68: #{_forward_first_impl.1} parent=39 // pred_fallthru
          _
        // Predicated region
        $region69: #{_forward_first_impl.1} parent=39 // pred_check
          %p1251 = pneg %p210
        $region70: #{_forward_first_impl.1} parent=39 // pred_check_branch
          %1253 = sbr.rel (%p1251) target = $region72
        $region71: #{_forward_first_impl.1} parent=39 // pred_region
          %s1254 = smul.u32 4, %s30
          %s1256 = ssub.s32 512, 512
          %1257 = vsyncadd %s1217, %s1256
          %s1258 = smul.addr %s1254, 128
          %s1259 = scalar_lea.hbm %s7, %s1258
          %s1261 = sshll.u32 %s1220, 4
          %s1262 = int_to_ptr.vmem [resolvable:$true] %s1261
          %1264 = dma.vmem_to_hbm [thread:$0]  %s1262, 512, %s1259, %s1217
        $region72: #{_forward_first_impl.1} parent=39 // pred_fallthru
          _
      $region40: #{_forward_first_impl.1} parent=5 // pred_fallthru
        _
      %p1265 = scmp.le.s32.totalorder 2, %s25
      // Predicated region
      $region73: #{_forward_first_impl.1} parent=5 // pred_check
        %p1266 = pneg %p1265
      $region74: #{_forward_first_impl.1} parent=5 // pred_check_branch
        %1268 = sbr.rel (%p1266) target = $region76
      $region75: #{_forward_first_impl.1} parent=5 // pred_region
        %s1269 = ssub.s32 %s25, 2
        // Predicated region
        $region77: #{_forward_first_impl.1} parent=75 // pred_check
          %p1270 = pneg %p164
        $region78: #{_forward_first_impl.1} parent=75 // pred_check_branch
          %1272 = sbr.rel (%p1270) target = $region80
        $region79: #{_forward_first_impl.1} parent=75 // pred_region
          %s1273 = sand.u32 %s149, 1
          %s1274 = scalar_lea.sflag [#allocation4], %s1273
          %s1275 = sand.u32 %s149, 1
          %s1276 = smul.addr %s1275, 256
          %s1277 = scalar_lea.vmem [#allocation11], %s1276
          %1278 = dma.done %s1274, 4096
        $region80: #{_forward_first_impl.1} parent=75 // pred_fallthru
          _
        // Predicated region
        $region81: #{_forward_first_impl.1} parent=75 // pred_check
          %p1279 = pneg %p190
        $region82: #{_forward_first_impl.1} parent=75 // pred_check_branch
          %1281 = sbr.rel (%p1279) target = $region84
        $region83: #{_forward_first_impl.1} parent=75 // pred_region
          %s1282 = sand.u32 %s31, 1
          %s1283 = scalar_lea.sflag [#allocation13], %s1282
          %s1284 = sand.u32 %s175, 1
          %s1285 = smul.addr %s1284, 32
          %s1286 = scalar_lea.vmem [#allocation12], %s1285
          %1287 = dma.done %s1283, 512
        $region84: #{_forward_first_impl.1} parent=75 // pred_fallthru
          _
        // Predicated region
        $region85: #{_forward_first_impl.1} parent=75 // pred_check
          %p1288 = pneg %p216
        $region86: #{_forward_first_impl.1} parent=75 // pred_check_branch
          %1290 = sbr.rel (%p1288) target = $region88
        $region87: #{_forward_first_impl.1} parent=75 // pred_region
          %s1291 = sand.u32 %s31, 1
          %s1292 = scalar_lea.sflag [#allocation13], %s1291
          %s1293 = sand.u32 %s201, 1
          %s1294 = smul.addr %s1293, 32
          %s1295 = scalar_lea.vmem [#allocation14], %s1294
          %1296 = dma.done %s1292, 512
        $region88: #{_forward_first_impl.1} parent=75 // pred_fallthru
          _
      $region76: #{_forward_first_impl.1} parent=5 // pred_fallthru
        _
    $region6: #{_forward_first_impl.1} parent=1 // loop_footer
      %s29 = sadd.s32 1, %s25
    $region7: #{_forward_first_impl.1} parent=1 // loop_footer_branch
      %24 = sbr.rel target = $region3
    $region8: #{_forward_first_impl.1} parent=1 // loop_exit
      _
    %1297 = vsyncpa [#allocation3], 1
    %s1298 = scalar_lea.sflag [#allocation3], 1
    %1299 = vsyncpa %s1298, 1
    %1300 = vsyncpa [#allocation6], 1
    %1301 = vsyncpa [#allocation9], 1
    %1302 = vsyncpa [#allocation4], 1
    %s1303 = scalar_lea.sflag [#allocation4], 1
    %1304 = vsyncpa %s1303, 1
    %1305 = vsyncpa [#allocation13], 1
    %s1306 = scalar_lea.sflag [#allocation13], 1
    %1307 = vsyncpa %s1306, 1

// kernel: _forward_first_impl.1
$region0: #{_forward_first_impl.1}
  #allocation0 [shape = 'u32[]', space=smem, size = 0x4, offset = 0x4, fixed_abs, tag = 'smem constant byte address 0x4 - core index']
  #allocation1 [shape = 'u32[144,128]{1,0:T(1,128)}', space=vmem, size = 0x12000, scoped, tag = 'internal scratch']
  %s0 = inlined_call_operand.hbm [shape: f32[1,1024], index: 0, kind: input, shape index: {}]
  %s1 = inlined_call_operand.hbm [shape: f32[5,1], index: 1, kind: input, shape index: {}]
  %s2 = inlined_call_operand.hbm [shape: f32[5,1], index: 2, kind: input, shape index: {}]
  %s3 = inlined_call_operand.hbm [shape: f32[40,5], index: 3, kind: input, shape index: {}]
  %s4 = inlined_call_operand.hbm [shape: f32[40,1], index: 4, kind: input, shape index: {}]
  %s5 = inlined_call_operand.hbm [shape: bf16[40,1024], index: 5, kind: output, shape index: {0}]
  %s6 = inlined_call_operand.hbm [shape: f32[5,1024], index: 6, kind: output, shape index: {1}]
  %s7 = inlined_call_operand.hbm [shape: f32[5,1024], index: 7, kind: output, shape index: {2}]
  %8 = xla_tuple %s5, %s6, %s7
  %s9 = sld [smem:[#allocation0]]
  $region89: #{_forward_first_impl.1} parent=0
    _
  %s11 = ssub.s32 1, %s9
  %s12 = scalar_select 0, %s11, %s9
  $region1: #{_forward_first_impl.1} parent=0
    #allocation2 [shape = 'u8[4096]{0}', space=vmem, size = 0x1000, scoped, tag = 'input window, operand 0']
    #allocation3 [shape = 's32[2]{0}', space=sflag, size = 0x8, scoped, tag = 'scoped memory for _forward_first_impl.1']
    #allocation4 [shape = 's32[2]{0}', space=sflag, size = 0x8, scoped, tag = 'scoped memory for _forward_first_impl.1']
    #allocation5 [shape = 'u8[4096]{0}', space=vmem, size = 0x1000, scoped, tag = 'input window, operand 1, single buffered']
    #allocation6 [shape = 's32[1]{0}', space=sflag, size = 0x4, scoped, tag = 'scoped memory for _forward_first_impl.1']
    #allocation7 [shape = 'u8[4096]{0}', space=vmem, size = 0x1000, scoped, tag = 'input window, operand 2, single buffered']
    #allocation8 [shape = 'u8[20480]{0}', space=vmem, size = 0x5000, scoped, tag = 'input window, operand 3, single buffered']
    #allocation9 [shape = 's32[1]{0}', space=sflag, size = 0x4, scoped, tag = 'scoped memory for _forward_first_impl.1']
    #allocation10 [shape = 'u8[20480]{0}', space=vmem, size = 0x5000, scoped, tag = 'input window, operand 4, single buffered']
    #allocation11 [shape = 'u8[81920]{0}', space=vmem, size = 0x14000, scoped, tag = 'output window, operand 0']
    #allocation12 [shape = 'u8[32768]{0}', space=vmem, size = 0x8000, scoped, tag = 'output window, operand 1']
    #allocation13 [shape = 's32[2]{0}', space=sflag, size = 0x8, scoped, tag = 'scoped memory for _forward_first_impl.1']
    #allocation14 [shape = 'u8[32768]{0}', space=vmem, size = 0x8000, scoped, tag = 'output window, operand 2']
    %13 = vsyncpa [#allocation3], 0
    %s14 = scalar_lea.sflag [#allocation3], 1
    %15 = vsyncpa %s14, 0
    %16 = vsyncpa [#allocation6], 0
    %17 = vsyncpa [#allocation9], 0
    %18 = vsyncpa [#allocation4], 0
    %s19 = scalar_lea.sflag [#allocation4], 1
    %20 = vsyncpa %s19, 0
    %21 = vsyncpa [#allocation13], 0
    %s22 = scalar_lea.sflag [#allocation13], 1
    %23 = vsyncpa %s22, 0
    loop: start=0, step=1, limit=4
    $region2: #{_forward_first_impl.1} parent=1 // loop_pre_header
      _
    $region3: #{_forward_first_impl.1} parent=1 // loop_header
      %s25 = sphi 0, %s29
      %p26 = scmp.ge.s32.totalorder %s25, 4
      %s35 = sphi 0, %s37
      %s38 = sphi 0, %s35
      %s39 = sphi 0, %s38
      %s55 = sphi 0, %s39
      %s59 = sphi 0, %s59
      %s61 = sphi 0, %s59
      %s62 = sphi 0, %s61
      %s76 = sphi 0, %s62
      %s80 = sphi 0, %s80
      %s82 = sphi 0, %s80
      %s83 = sphi 0, %s82
      %s97 = sphi 0, %s83
      %s101 = sphi 0, %s101
      %s103 = sphi 0, %s101
      %s104 = sphi 0, %s103
      %s118 = sphi 0, %s104
      %s122 = sphi 0, %s122
      %s124 = sphi 0, %s122
      %s125 = sphi 0, %s124
      %s139 = sphi 0, %s125
      %s145 = sphi 0, %s147
      %s148 = sphi 0, %s145
      %s149 = sphi 0, %s148
      %s165 = sphi 0, %s149
      %s171 = sphi 0, %s173
      %s174 = sphi 0, %s171
      %s175 = sphi 0, %s174
      %s191 = sphi 0, %s175
      %s197 = sphi 0, %s199
      %s200 = sphi 0, %s197
      %s201 = sphi 0, %s200
      %s217 = sphi 0, %s201
    $region4: #{_forward_first_impl.1} parent=1 // loop_header_branch
      %28 = sbr.rel (%p26) target = $region8
    $region5: #{_forward_first_impl.1} parent=1 // loop_body
      %s30 = ssub.s32 %s25, 1
      %s31 = ssub.s32 %s25, 2
      %s32 = sadd.s32 %s25, 1
      %s33 = ssub.s32 %s25, %s32
      %p34 = scmp.eq.s32.totalorder %s33, 0
      %s36 = sadd.s32 %s35, 1
      %s37 = scalar_select %p34, %s35, %s36
      %p40 = pneg %p34
      %p41 = scmp.eq.s32.totalorder %s25, 1
      %p42 = por %p40, %p41
      %p43 = scmp.ne.s32.totalorder %s35, %s38
      %p44 = scmp.eq.s32.totalorder %s25, 0
      %p45 = por %p43, %p44
      %p46 = scmp.ne.s32.totalorder %s35, %s38
      %p47 = scmp.eq.s32.totalorder %s30, 1
      %p48 = por %p46, %p47
      %p49 = scmp.ne.s32.totalorder %s38, %s39
      %p50 = scmp.eq.s32.totalorder %s30, 0
      %p51 = por %p49, %p50
      %p52 = scmp.ne.s32.totalorder %s38, %s39
      %p53 = scmp.eq.s32.totalorder %s31, 1
      %p54 = por %p52, %p53
      %p56 = scmp.ne.s32.totalorder %s39, %s55
      %p57 = scmp.eq.s32.totalorder %s31, 0
      %p58 = por %p56, %p57
      %s60 = sadd.s32 %s59, 1
      %p63 = scmp.eq.s32.totalorder %s25, 1
      %p64 = scmp.ne.s32.totalorder %s59, %s61
      %p65 = scmp.eq.s32.totalorder %s25, 0
      %p66 = por %p64, %p65
      %p67 = scmp.ne.s32.totalorder %s59, %s61
      %p68 = scmp.eq.s32.totalorder %s30, 1
      %p69 = por %p67, %p68
      %p70 = scmp.ne.s32.totalorder %s61, %s62
      %p71 = scmp.eq.s32.totalorder %s30, 0
      %p72 = por %p70, %p71
      %p73 = scmp.ne.s32.totalorder %s61, %s62
      %p74 = scmp.eq.s32.totalorder %s31, 1
      %p75 = por %p73, %p74
      %p77 = scmp.ne.s32.totalorder %s62, %s76
      %p78 = scmp.eq.s32.totalorder %s31, 0
      %p79 = por %p77, %p78
      %s81 = sadd.s32 %s80, 1
      %p84 = scmp.eq.s32.totalorder %s25, 1
      %p85 = scmp.ne.s32.totalorder %s80, %s82
      %p86 = scmp.eq.s32.totalorder %s25, 0
      %p87 = por %p85, %p86
      %p88 = scmp.ne.s32.totalorder %s80, %s82
      %p89 = scmp.eq.s32.totalorder %s30, 1
      %p90 = por %p88, %p89
      %p91 = scmp.ne.s32.totalorder %s82, %s83
      %p92 = scmp.eq.s32.totalorder %s30, 0
      %p93 = por %p91, %p92
      %p94 = scmp.ne.s32.totalorder %s82, %s83
      %p95 = scmp.eq.s32.totalorder %s31, 1
      %p96 = por %p94, %p95
      %p98 = scmp.ne.s32.totalorder %s83, %s97
      %p99 = scmp.eq.s32.totalorder %s31, 0
      %p100 = por %p98, %p99
      %s102 = sadd.s32 %s101, 1
      %p105 = scmp.eq.s32.totalorder %s25, 1
      %p106 = scmp.ne.s32.totalorder %s101, %s103
      %p107 = scmp.eq.s32.totalorder %s25, 0
      %p108 = por %p106, %p107
      %p109 = scmp.ne.s32.totalorder %s101, %s103
      %p110 = scmp.eq.s32.totalorder %s30, 1
      %p111 = por %p109, %p110
      %p112 = scmp.ne.s32.totalorder %s103, %s104
      %p113 = scmp.eq.s32.totalorder %s30, 0
      %p114 = por %p112, %p113
      %p115 = scmp.ne.s32.totalorder %s103, %s104
      %p116 = scmp.eq.s32.totalorder %s31, 1
      %p117 = por %p115, %p116
      %p119 = scmp.ne.s32.totalorder %s104, %s118
      %p120 = scmp.eq.s32.totalorder %s31, 0
      %p121 = por %p119, %p120
      %s123 = sadd.s32 %s122, 1
      %p126 = scmp.eq.s32.totalorder %s25, 1
      %p127 = scmp.ne.s32.totalorder %s122, %s124
      %p128 = scmp.eq.s32.totalorder %s25, 0
      %p129 = por %p127, %p128
      %p130 = scmp.ne.s32.totalorder %s122, %s124
      %p131 = scmp.eq.s32.totalorder %s30, 1
      %p132 = por %p130, %p131
      %p133 = scmp.ne.s32.totalorder %s124, %s125
      %p134 = scmp.eq.s32.totalorder %s30, 0
      %p135 = por %p133, %p134
      %p136 = scmp.ne.s32.totalorder %s124, %s125
      %p137 = scmp.eq.s32.totalorder %s31, 1
      %p138 = por %p136, %p137
      %p140 = scmp.ne.s32.totalorder %s125, %s139
      %p141 = scmp.eq.s32.totalorder %s31, 0
      %p142 = por %p140, %p141
      %s143 = ssub.s32 %s25, %s32
      %p144 = scmp.eq.s32.totalorder %s143, 0
      %s146 = sadd.s32 %s145, 1
      %s147 = scalar_select %p144, %s145, %s146
      %p150 = pneg %p144
      %p151 = scmp.eq.s32.totalorder %s25, 1
      %p152 = por %p150, %p151
      %p153 = scmp.ne.s32.totalorder %s145, %s148
      %p154 = scmp.eq.s32.totalorder %s25, 0
      %p155 = por %p153, %p154
      %p156 = scmp.ne.s32.totalorder %s145, %s148
      %p157 = scmp.eq.s32.totalorder %s30, 1
      %p158 = por %p156, %p157
      %p159 = scmp.ne.s32.totalorder %s148, %s149
      %p160 = scmp.eq.s32.totalorder %s30, 0
      %p161 = por %p159, %p160
      %p162 = scmp.ne.s32.totalorder %s148, %s149
      %p163 = scmp.eq.s32.totalorder %s31, 1
      %p164 = por %p162, %p163
      %p166 = scmp.ne.s32.totalorder %s149, %s165
      %p167 = scmp.eq.s32.totalorder %s31, 0
      %p168 = por %p166, %p167
      %s169 = ssub.s32 %s25, %s32
      %p170 = scmp.eq.s32.totalorder %s169, 0
      %s172 = sadd.s32 %s171, 1
      %s173 = scalar_select %p170, %s171, %s172
      %p176 = pneg %p170
      %p177 = scmp.eq.s32.totalorder %s25, 1
      %p178 = por %p176, %p177
      %p179 = scmp.ne.s32.totalorder %s171, %s174
      %p180 = scmp.eq.s32.totalorder %s25, 0
      %p181 = por %p179, %p180
      %p182 = scmp.ne.s32.totalorder %s171, %s174
      %p183 = scmp.eq.s32.totalorder %s30, 1
      %p184 = por %p182, %p183
      %p185 = scmp.ne.s32.totalorder %s174, %s175
      %p186 = scmp.eq.s32.totalorder %s30, 0
      %p187 = por %p185, %p186
      %p188 = scmp.ne.s32.totalorder %s174, %s175
      %p189 = scmp.eq.s32.totalorder %s31, 1
      %p190 = por %p188, %p189
      %p192 = scmp.ne.s32.totalorder %s175, %s191
      %p193 = scmp.eq.s32.totalorder %s31, 0
      %p194 = por %p192, %p193
      %s195 = ssub.s32 %s25, %s32
      %p196 = scmp.eq.s32.totalorder %s195, 0
      %s198 = sadd.s32 %s197, 1
      %s199 = scalar_select %p196, %s197, %s198
      %p202 = pneg %p196
      %p203 = scmp.eq.s32.totalorder %s25, 1
      %p204 = por %p202, %p203
      %p205 = scmp.ne.s32.totalorder %s197, %s200
      %p206 = scmp.eq.s32.totalorder %s25, 0
      %p207 = por %p205, %p206
      %p208 = scmp.ne.s32.totalorder %s197, %s200
      %p209 = scmp.eq.s32.totalorder %s30, 1
      %p210 = por %p208, %p209
      %p211 = scmp.ne.s32.totalorder %s200, %s201
      %p212 = scmp.eq.s32.totalorder %s30, 0
      %p213 = por %p211, %p212
      %p214 = scmp.ne.s32.totalorder %s200, %s201
      %p215 = scmp.eq.s32.totalorder %s31, 1
      %p216 = por %p214, %p215
      %p218 = scmp.ne.s32.totalorder %s201, %s217
      %p219 = scmp.eq.s32.totalorder %s31, 0
      %p220 = por %p218, %p219
      %p221 = scmp.le.s32.totalorder 1, %s25
      %p222 = scmp.lt.s32.totalorder %s25, 3
      %p223 = pnand %p221, %p222
      %p224 = pneg %p223
      // Predicated region
      $region9: #{_forward_first_impl.1} parent=5 // pred_check
        _
      $region10: #{_forward_first_impl.1} parent=5 // pred_check_branch
        %226 = sbr.rel (%p223) target = $region12
      $region11: #{_forward_first_impl.1} parent=5 // pred_region
        %s227 = ssub.s32 %s25, 1
        // Predicated region
        $region13: #{_forward_first_impl.1} parent=11 // pred_check
          %p228 = pneg %p72
        $region14: #{_forward_first_impl.1} parent=11 // pred_check_branch
          %230 = sbr.rel (%p228) target = $region16
        $region15: #{_forward_first_impl.1} parent=11 // pred_region
          %s232 = ssub.s32 128, 128
          %233 = vsyncadd [#allocation6], %s232
          %s235 = sshll.u32 [#allocation5], 4
          %s236 = int_to_ptr.vmem [resolvable:$true] %s235
          %238 = dma.hbm_to_vmem [thread:$0]  %s1, 128, %s236, [#allocation6]
        $region16: #{_forward_first_impl.1} parent=11 // pred_fallthru
          _
        // Predicated region
        $region17: #{_forward_first_impl.1} parent=11 // pred_check
          %p239 = pneg %p93
        $region18: #{_forward_first_impl.1} parent=11 // pred_check_branch
          %241 = sbr.rel (%p239) target = $region20
        $region19: #{_forward_first_impl.1} parent=11 // pred_region
          %s243 = ssub.s32 128, 128
          %244 = vsyncadd [#allocation6], %s243
          %s246 = sshll.u32 [#allocation7], 4
          %s247 = int_to_ptr.vmem [resolvable:$true] %s246
          %249 = dma.hbm_to_vmem [thread:$0]  %s2, 128, %s247, [#allocation6]
        $region20: #{_forward_first_impl.1} parent=11 // pred_fallthru
          _
        // Predicated region
        $region21: #{_forward_first_impl.1} parent=11 // pred_check
          %p250 = pneg %p114
        $region22: #{_forward_first_impl.1} parent=11 // pred_check_branch
          %252 = sbr.rel (%p250) target = $region24
        $region23: #{_forward_first_impl.1} parent=11 // pred_region
          %s254 = ssub.s32 640, 640
          %255 = vsyncadd [#allocation9], %s254
          %s256 = sshll.u32 [#allocation8], 4
          %s257 = int_to_ptr.vmem [resolvable:$true] %s256
          %262 = dma.hbm_to_vmem [thread:$0]  %s3, 640, %s257, [#allocation9], 128, 128, 8
        $region24: #{_forward_first_impl.1} parent=11 // pred_fallthru
          _
        // Predicated region
        $region25: #{_forward_first_impl.1} parent=11 // pred_check
          %p263 = pneg %p135
        $region26: #{_forward_first_impl.1} parent=11 // pred_check_branch
          %265 = sbr.rel (%p263) target = $region28
        $region27: #{_forward_first_impl.1} parent=11 // pred_region
          %s267 = ssub.s32 640, 640
          %268 = vsyncadd [#allocation9], %s267
          %s269 = sshll.u32 [#allocation10], 4
          %s270 = int_to_ptr.vmem [resolvable:$true] %s269
          %275 = dma.hbm_to_vmem [thread:$0]  %s4, 640, %s270, [#allocation9], 128, 128, 8
        $region28: #{_forward_first_impl.1} parent=11 // pred_fallthru
          _
      $region12: #{_forward_first_impl.1} parent=5 // pred_fallthru
        _
      %p276 = scmp.lt.s32.totalorder %s25, 2
      // Predicated region
      $region29: #{_forward_first_impl.1} parent=5 // pred_check
        %p277 = pneg %p276
      $region30: #{_forward_first_impl.1} parent=5 // pred_check_branch
        %279 = sbr.rel (%p277) target = $region32
      $region31: #{_forward_first_impl.1} parent=5 // pred_region
        // Predicated region
        $region33: #{_forward_first_impl.1} parent=31 // pred_check
          %p280 = pneg %p45
        $region34: #{_forward_first_impl.1} parent=31 // pred_check_branch
          %282 = sbr.rel (%p280) target = $region36
        $region35: #{_forward_first_impl.1} parent=31 // pred_region
          %s283 = sand.u32 %s35, 1
          %s284 = scalar_lea.sflag [#allocation3], %s283
          %s285 = sand.u32 %s35, 1
          %s286 = smul.addr %s285, 4
          %s287 = scalar_lea.vmem [#allocation2], %s286
          %s288 = smul.u32 4, %s25
          %s290 = ssub.s32 64, 64
          %291 = vsyncadd %s284, %s290
          %s292 = smul.addr %s288, 16
          %s293 = scalar_lea.hbm %s0, %s292
          %s295 = sshll.u32 %s287, 4
          %s296 = int_to_ptr.vmem [resolvable:$true] %s295
          %298 = dma.hbm_to_vmem [thread:$0]  %s293, 64, %s296, %s284
        $region36: #{_forward_first_impl.1} parent=31 // pred_fallthru
          _
      $region32: #{_forward_first_impl.1} parent=5 // pred_fallthru
        _
      %p299 = scmp.le.s32.totalorder 1, %s25
      %p300 = scmp.lt.s32.totalorder %s25, 3
      %p301 = pnand %p299, %p300
      %p302 = pneg %p301
      // Predicated region
      $region37: #{_forward_first_impl.1} parent=5 // pred_check
        _
      $region38: #{_forward_first_impl.1} parent=5 // pred_check_branch
        %304 = sbr.rel (%p301) target = $region40
      $region39: #{_forward_first_impl.1} parent=5 // pred_region
        %s305 = ssub.s32 %s25, 1
        %s306 = sand.u32 %s38, 1
        %s307 = scalar_lea.sflag [#allocation3], %s306
        %s308 = sand.u32 %s38, 1
        %s309 = smul.addr %s308, 4
        %s310 = scalar_lea.vmem [#allocation2], %s309
        // Predicated region
        $region41: #{_forward_first_impl.1} parent=39 // pred_check
          %p311 = pneg %p51
        $region42: #{_forward_first_impl.1} parent=39 // pred_check_branch
          %313 = sbr.rel (%p311) target = $region44
        $region43: #{_forward_first_impl.1} parent=39 // pred_region
          %314 = dma.done %s307, 64
        $region44: #{_forward_first_impl.1} parent=39 // pred_fallthru
          _
        // Predicated region
        $region45: #{_forward_first_impl.1} parent=39 // pred_check
          %p315 = pneg %p72
        $region46: #{_forward_first_impl.1} parent=39 // pred_check_branch
          %317 = sbr.rel (%p315) target = $region48
        $region47: #{_forward_first_impl.1} parent=39 // pred_region
          %318 = dma.done [#allocation6], 128
        $region48: #{_forward_first_impl.1} parent=39 // pred_fallthru
          _
        // Predicated region
        $region49: #{_forward_first_impl.1} parent=39 // pred_check
          %p319 = pneg %p93
        $region50: #{_forward_first_impl.1} parent=39 // pred_check_branch
          %321 = sbr.rel (%p319) target = $region52
        $region51: #{_forward_first_impl.1} parent=39 // pred_region
          %322 = dma.done [#allocation6], 128
        $region52: #{_forward_first_impl.1} parent=39 // pred_fallthru
          _
        // Predicated region
        $region53: #{_forward_first_impl.1} parent=39 // pred_check
          %p323 = pneg %p114
        $region54: #{_forward_first_impl.1} parent=39 // pred_check_branch
          %325 = sbr.rel (%p323) target = $region56
        $region55: #{_forward_first_impl.1} parent=39 // pred_region
          %326 = dma.done [#allocation9], 640
        $region56: #{_forward_first_impl.1} parent=39 // pred_fallthru
          _
        // Predicated region
        $region57: #{_forward_first_impl.1} parent=39 // pred_check
          %p327 = pneg %p135
        $region58: #{_forward_first_impl.1} parent=39 // pred_check_branch
          %329 = sbr.rel (%p327) target = $region60
        $region59: #{_forward_first_impl.1} parent=39 // pred_region
          %330 = dma.done [#allocation9], 640
        $region60: #{_forward_first_impl.1} parent=39 // pred_fallthru
          _
        %s331 = sand.u32 %s38, 1
        %s332 = scalar_lea.sflag [#allocation3], %s331
        %s333 = sand.u32 %s38, 1
        %s334 = smul.addr %s333, 4
        %s335 = scalar_lea.vmem [#allocation2], %s334
        %p336 = pneg %p51
        %p337 = pneg %p48
        %p338 = pneg %p72
        %p339 = pneg %p69
        %p340 = pneg %p93
        %p341 = pneg %p90
        %p342 = pneg %p114
        %p343 = pneg %p111
        %p344 = pneg %p135
        %p345 = pneg %p132
        %p346 = pneg %p161
        %p347 = pneg %p158
        %s348 = sand.u32 %s148, 1
        %s349 = scalar_lea.sflag [#allocation4], %s348
        %s350 = sand.u32 %s148, 1
        %s351 = smul.addr %s350, 80
        %s352 = scalar_lea.vmem [#allocation11], %s351
        %p353 = pneg %p187
        %p354 = pneg %p184
        %s355 = sand.u32 %s30, 1
        %s356 = scalar_lea.sflag [#allocation13], %s355
        %s357 = sand.u32 %s174, 1
        %s358 = smul.addr %s357, 32
        %s359 = scalar_lea.vmem [#allocation12], %s358
        %p360 = pneg %p213
        %p361 = pneg %p210
        %s362 = sand.u32 %s30, 1
        %s363 = scalar_lea.sflag [#allocation13], %s362
        %s364 = sand.u32 %s200, 1
        %s365 = smul.addr %s364, 32
        %s366 = scalar_lea.vmem [#allocation14], %s365
        %s367 = smul.u32 4, %s30
        %s368 = smul.u32 4, %s30
        %s369 = smul.u32 4, %s30
        %s370 = smul.u32 4, %s30
        %v371 = vld [vmem:[%s310] sm:$0xf]
        %v373 = vlaneseq
        %v374 = vshrl.u32 %v373, 7
        %v375 = vsub.s32 0, %v374
        %v376 = vrot.slane %v371, %v375
        %v377 = vlaneseq
        %v378 = vshrl.u32 %v377, 7
        %v379 = vsub.s32 1, %v378
        %v380 = vrot.slane %v371, %v379
        %v381 = vlaneseq
        %v382 = vshrl.u32 %v381, 7
        %v383 = vsub.s32 2, %v382
        %v384 = vrot.slane %v371, %v383
        %v385 = vlaneseq
        %v386 = vshrl.u32 %v385, 7
        %v387 = vsub.s32 3, %v386
        %v388 = vrot.slane %v371, %v387
        %v393 = vmul.f32 %v371, %v371
        %v395 = vlaneseq
        %v396 = vshrl.u32 %v395, 7
        %v397 = vsub.s32 0, %v396
        %v398 = vrot.slane %v393, %v397
        %v399 = vlaneseq
        %v400 = vshrl.u32 %v399, 7
        %v401 = vsub.s32 1, %v400
        %v402 = vrot.slane %v393, %v401
        %v403 = vlaneseq
        %v404 = vshrl.u32 %v403, 7
        %v405 = vsub.s32 2, %v404
        %v406 = vrot.slane %v393, %v405
        %v407 = vlaneseq
        %v408 = vshrl.u32 %v407, 7
        %v409 = vsub.s32 3, %v408
        %v410 = vrot.slane %v393, %v409
        %415 = vst [vmem:[%s359] sm:$0x1f] %v376
        %416 = vst [vmem:[%s359 + $0x8] sm:$0x1f] %v380
        %417 = vst [vmem:[%s359 + $0x10] sm:$0x1f] %v384
        %418 = vst [vmem:[%s359 + $0x18] sm:$0x1f] %v388
        %419 = vst [vmem:[%s366] sm:$0x1f] %v398
        %420 = vst [vmem:[%s366 + $0x8] sm:$0x1f] %v402
        %421 = vst [vmem:[%s366 + $0x10] sm:$0x1f] %v406
        %422 = vst [vmem:[%s366 + $0x18] sm:$0x1f] %v410
        %v423 = vld [vmem:[#allocation5] sm:$0x1f]
        %v424 = vld [vmem:[#allocation7] sm:$0x1f]
        %v425 = vld [vmem:[#allocation8] sm:$0xff]
        %v426 = vld [vmem:[#allocation8 + $0x8] sm:$0xff]
        %v427 = vld [vmem:[#allocation8 + $0x10] sm:$0xff]
        %v428 = vld [vmem:[#allocation8 + $0x18] sm:$0xff]
        %v429 = vld [vmem:[#allocation8 + $0x20] sm:$0xff]
        %v430 = vld [vmem:[#allocation10] sm:$0xff]
        %v431 = vld [vmem:[#allocation10 + $0x8] sm:$0xff]
        %v432 = vld [vmem:[#allocation10 + $0x10] sm:$0xff]
        %v433 = vld [vmem:[#allocation10 + $0x18] sm:$0xff]
        %v434 = vld [vmem:[#allocation10 + $0x20] sm:$0xff]
        %436 = vset.pattern.permute.xlu0 0
        %437 = vperm.xlu0 %436, %v423
        %v438 = vpop.permute.xlu0 %437
        %v440 = vmul.f32 %v376, %v438
        %v441 = vmul.f32 %v380, %v438
        %v442 = vmul.f32 %v384, %v438
        %v443 = vmul.f32 %v388, %v438
        %445 = vset.pattern.permute.xlu0 0
        %446 = vperm.xlu0 %445, %v424
        %v447 = vpop.permute.xlu0 %446
        %v449 = vmul.f32 %v398, %v447
        %v450 = vmul.f32 %v402, %v447
        %v451 = vmul.f32 %v406, %v447
        %v452 = vmul.f32 %v410, %v447
        %v453 = vrsqrt.pop %v449
        %v454 = vmul.f32 %v449, %v453
        %vm455 = vcmp.eq.f32.partialorder %v449, inf
        %v456 = vsel %vm455, %v449, %v454
        %vm457 = vcmp.eq.f32.partialorder %v449, 0.0
        %v458 = vand.u32 %v449, 2147483648
        %v459 = vsel %vm457, %v458, %v456
        %v460 = vrsqrt.pop %v450
        %v461 = vmul.f32 %v450, %v460
        %vm462 = vcmp.eq.f32.partialorder %v450, inf
        %v463 = vsel %vm462, %v450, %v461
        %vm464 = vcmp.eq.f32.partialorder %v450, 0.0
        %v465 = vand.u32 %v450, 2147483648
        %v466 = vsel %vm464, %v465, %v463
        %v467 = vrsqrt.pop %v451
        %v468 = vmul.f32 %v451, %v467
        %vm469 = vcmp.eq.f32.partialorder %v451, inf
        %v470 = vsel %vm469, %v451, %v468
        %vm471 = vcmp.eq.f32.partialorder %v451, 0.0
        %v472 = vand.u32 %v451, 2147483648
        %v473 = vsel %vm471, %v472, %v470
        %v474 = vrsqrt.pop %v452
        %v475 = vmul.f32 %v452, %v474
        %vm476 = vcmp.eq.f32.partialorder %v452, inf
        %v477 = vsel %vm476, %v452, %v475
        %vm478 = vcmp.eq.f32.partialorder %v452, 0.0
        %v479 = vand.u32 %v452, 2147483648
        %v480 = vsel %vm478, %v479, %v477
        %v481 = vadd.f32 %v459, 1e-09
        %v482 = vadd.f32 %v466, 1e-09
        %v483 = vadd.f32 %v473, 1e-09
        %v484 = vadd.f32 %v480, 1e-09
        %v485 = vrcp.pop %v481
        %v486 = vrcp.pop %v482
        %v487 = vrcp.pop %v483
        %v488 = vrcp.pop %v484
        %v489 = vmul.f32 %v440, %v485
        %v490 = vmul.f32 %v441, %v486
        %v491 = vmul.f32 %v442, %v487
        %v492 = vmul.f32 %v443, %v488
        %494 = vset.pattern.permute.xlu0 0
        %495 = vperm.xlu0 %494, %v430
        %v496 = vpop.permute.xlu0 %495
        %499 = vset.pattern.permute.xlu0 0
        %500 = vperm.xlu0 %499, %v431
        %v501 = vpop.permute.xlu0 %500
        %504 = vset.pattern.permute.xlu0 0
        %505 = vperm.xlu0 %504, %v432
        %v506 = vpop.permute.xlu0 %505
        %509 = vset.pattern.permute.xlu0 0
        %510 = vperm.xlu0 %509, %v433
        %v511 = vpop.permute.xlu0 %510
        %514 = vset.pattern.permute.xlu0 0
        %515 = vperm.xlu0 %514, %v434
        %v516 = vpop.permute.xlu0 %515
        %vm518 = vcmask 39936
        %v520 = vsel %vm518, %v425, 0
        %v523 = vsel %vm518, %v426, 0
        %v526 = vsel %vm518, %v427, 0
        %v529 = vsel %vm518, %v428, 0
        %v532 = vsel %vm518, %v429, 0
        %vm534 = vcmask 1044480
        %v536 = vsel %vm534, %v489, 0
        %v539 = vsel %vm534, %v490, 0
        %v542 = vsel %vm534, %v491, 0
        %v545 = vsel %vm534, %v492, 0
        %547 = vmatprep.subr.mxu0 %v539
        %548 = vmatpush1.msra.mxu0 %v536
        %549 = vmatprep.subr.mxu0 0.0
        %550 = vmatpush1.msra.mxu0 0.0
        %551 = vmatprep.subr.mxu0 0.0
        %552 = vmatpush1.msra.mxu0 0.0
        %553 = vmatprep.subr.mxu0 0.0
        %554 = vmatpush1.msra.mxu0 0.0
        %555 = vmatprep.subr.mxu0 0.0
        %556 = vmatpush1.msra.mxu0 0.0
        %557 = vmatprep.subr.mxu0 0.0
        %558 = vmatpush1.msra.mxu0 0.0
        %559 = vmatprep.subr.mxu0 0.0
        %560 = vmatpush1.msra.mxu0 0.0
        %561 = vmatprep.subr.mxu0 0.0
        %562 = vmatpush1.msra.mxu0 0.0
        %563 = vmatprep.subr.mxu0 0.0
        %564 = vmatpush1.msra.mxu0 0.0
        %565 = vmatprep.subr.mxu0 0.0
        %566 = vmatpush1.msra.mxu0 0.0
        %567 = vmatprep.subr.mxu0 0.0
        %568 = vmatpush1.msra.mxu0 0.0
        %569 = vmatprep.subr.mxu0 0.0
        %570 = vmatpush1.msra.mxu0 0.0
        %571 = vmatprep.subr.mxu0 0.0
        %572 = vmatpush1.msra.mxu0 0.0
        %573 = vmatprep.subr.mxu0 0.0
        %574 = vmatpush1.msra.mxu0 0.0
        %575 = vmatprep.subr.mxu0 0.0
        %576 = vmatpush1.msra.mxu0 0.0
        %577 = vmatprep.subr.mxu0 0.0
        %578 = vmatpush1.msra.mxu0 0.0
        %579 = vmatprep.subr.mxu0 0.0
        %580 = vmatpush1.msra.mxu0 0.0
        %581 = vmatprep.subr.mxu0 0.0
        %582 = vmatpush1.msra.mxu0 0.0
        %583 = vmatprep.subr.mxu0 0.0
        %584 = vmatpush1.msra.mxu0 0.0
        %585 = vmatprep.subr.mxu0 0.0
        %586 = vmatpush1.msra.mxu0 0.0
        %587 = vmatprep.subr.mxu0 0.0
        %588 = vmatpush1.msra.mxu0 0.0
        %589 = vmatprep.subr.mxu0 0.0
        %590 = vmatpush1.msra.mxu0 0.0
        %591 = vmatprep.subr.mxu0 0.0
        %592 = vmatpush1.msra.mxu0 0.0
        %593 = vmatprep.subr.mxu0 0.0
        %594 = vmatpush1.msra.mxu0 0.0
        %595 = vmatprep.subr.mxu0 0.0
        %596 = vmatpush1.msra.mxu0 0.0
        %597 = vmatprep.subr.mxu0 0.0
        %598 = vmatpush1.msra.mxu0 0.0
        %599 = vmatprep.subr.mxu0 0.0
        %600 = vmatpush1.msra.mxu0 0.0
        %601 = vmatprep.subr.mxu0 0.0
        %602 = vmatpush1.msra.mxu0 0.0
        %603 = vmatprep.subr.mxu0 0.0
        %604 = vmatpush1.msra.mxu0 0.0
        %605 = vmatprep.subr.mxu0 0.0
        %606 = vmatpush1.msra.mxu0 0.0
        %607 = vmatprep.subr.mxu0 0.0
        %608 = vmatpush1.msra.mxu0 0.0
        %609 = vmatprep.subr.mxu0 0.0
        %610 = vmatpush1.msra.mxu0 0.0
        %611 = vmatprep.mubr.f32.mxu0 0.0
        %612 = vmatmul.mubr.f32.gmra.mrb[0].mxu0 %v520
        %v613 = vpop.f32.mrb[0].mxu0
        %v614 = vadd.f32 %v496, %v613
        %v615 = vpop.f32.mrb[0].mxu0
        %v616 = vadd.f32 %v496, %v615
        %617 = vmatprep.mubr.f32.mxu0 0.0
        %618 = vmatmul.mubr.f32.gmra.mrb[0].mxu0 %v523
        %v619 = vpop.f32.mrb[0].mxu0
        %v620 = vadd.f32 %v501, %v619
        %v621 = vpop.f32.mrb[0].mxu0
        %v622 = vadd.f32 %v501, %v621
        %623 = vmatprep.mubr.f32.mxu0 0.0
        %624 = vmatmul.mubr.f32.gmra.mrb[0].mxu0 %v526
        %v625 = vpop.f32.mrb[0].mxu0
        %v626 = vadd.f32 %v506, %v625
        %v627 = vpop.f32.mrb[0].mxu0
        %v628 = vadd.f32 %v506, %v627
        %629 = vmatprep.mubr.f32.mxu0 0.0
        %630 = vmatmul.mubr.f32.gmra.mrb[0].mxu0 %v529
        %v631 = vpop.f32.mrb[0].mxu0
        %v632 = vadd.f32 %v511, %v631
        %v633 = vpop.f32.mrb[0].mxu0
        %v634 = vadd.f32 %v511, %v633
        %635 = vmatprep.mubr.f32.mxu0 0.0
        %636 = vmatmul.mubr.f32.gmra.mrb[0].mxu0 %v532
        %v637 = vpop.f32.mrb[0].mxu0
        %v638 = vadd.f32 %v516, %v637
        %v639 = vpop.f32.mrb[0].mxu0
        %v640 = vadd.f32 %v516, %v639
        %641 = vdwg.mxu0
        %642 = vmatprep.subr.mxu0 %v545
        %643 = vmatpush1.msra.mxu0 %v542
        %644 = vmatprep.subr.mxu0 0.0
        %645 = vmatpush1.msra.mxu0 0.0
        %646 = vmatprep.subr.mxu0 0.0
        %647 = vmatpush1.msra.mxu0 0.0
        %648 = vmatprep.subr.mxu0 0.0
        %649 = vmatpush1.msra.mxu0 0.0
        %650 = vmatprep.subr.mxu0 0.0
        %651 = vmatpush1.msra.mxu0 0.0
        %652 = vmatprep.subr.mxu0 0.0
        %653 = vmatpush1.msra.mxu0 0.0
        %654 = vmatprep.subr.mxu0 0.0
        %655 = vmatpush1.msra.mxu0 0.0
        %656 = vmatprep.subr.mxu0 0.0
        %657 = vmatpush1.msra.mxu0 0.0
        %658 = vmatprep.subr.mxu0 0.0
        %659 = vmatpush1.msra.mxu0 0.0
        %660 = vmatprep.subr.mxu0 0.0
        %661 = vmatpush1.msra.mxu0 0.0
        %662 = vmatprep.subr.mxu0 0.0
        %663 = vmatpush1.msra.mxu0 0.0
        %664 = vmatprep.subr.mxu0 0.0
        %665 = vmatpush1.msra.mxu0 0.0
        %666 = vmatprep.subr.mxu0 0.0
        %667 = vmatpush1.msra.mxu0 0.0
        %668 = vmatprep.subr.mxu0 0.0
        %669 = vmatpush1.msra.mxu0 0.0
        %670 = vmatprep.subr.mxu0 0.0
        %671 = vmatpush1.msra.mxu0 0.0
        %672 = vmatprep.subr.mxu0 0.0
        %673 = vmatpush1.msra.mxu0 0.0
        %674 = vmatprep.subr.mxu0 0.0
        %675 = vmatpush1.msra.mxu0 0.0
        %676 = vmatprep.subr.mxu0 0.0
        %677 = vmatpush1.msra.mxu0 0.0
        %678 = vmatprep.subr.mxu0 0.0
        %679 = vmatpush1.msra.mxu0 0.0
        %680 = vmatprep.subr.mxu0 0.0
        %681 = vmatpush1.msra.mxu0 0.0
        %682 = vmatprep.subr.mxu0 0.0
        %683 = vmatpush1.msra.mxu0 0.0
        %684 = vmatprep.subr.mxu0 0.0
        %685 = vmatpush1.msra.mxu0 0.0
        %686 = vmatprep.subr.mxu0 0.0
        %687 = vmatpush1.msra.mxu0 0.0
        %688 = vmatprep.subr.mxu0 0.0
        %689 = vmatpush1.msra.mxu0 0.0
        %690 = vmatprep.subr.mxu0 0.0
        %691 = vmatpush1.msra.mxu0 0.0
        %692 = vmatprep.subr.mxu0 0.0
        %693 = vmatpush1.msra.mxu0 0.0
        %694 = vmatprep.subr.mxu0 0.0
        %695 = vmatpush1.msra.mxu0 0.0
        %696 = vmatprep.subr.mxu0 0.0
        %697 = vmatpush1.msra.mxu0 0.0
        %698 = vmatprep.subr.mxu0 0.0
        %699 = vmatpush1.msra.mxu0 0.0
        %700 = vmatprep.subr.mxu0 0.0
        %701 = vmatpush1.msra.mxu0 0.0
        %702 = vmatprep.subr.mxu0 0.0
        %703 = vmatpush1.msra.mxu0 0.0
        %704 = vmatprep.subr.mxu0 0.0
        %705 = vmatpush1.msra.mxu0 0.0
        %706 = vmatprep.mubr.f32.mxu0 0.0
        %707 = vmatmul.mubr.f32.gmra.mrb[0].mxu0 %v520
        %v708 = vpop.f32.mrb[0].mxu0
        %v709 = vadd.f32 %v496, %v708
        %v710 = vpop.f32.mrb[0].mxu0
        %v711 = vadd.f32 %v496, %v710
        %712 = vmatprep.mubr.f32.mxu0 0.0
        %713 = vmatmul.mubr.f32.gmra.mrb[0].mxu0 %v523
        %v714 = vpop.f32.mrb[0].mxu0
        %v715 = vadd.f32 %v501, %v714
        %v716 = vpop.f32.mrb[0].mxu0
        %v717 = vadd.f32 %v501, %v716
        %718 = vmatprep.mubr.f32.mxu0 0.0
        %719 = vmatmul.mubr.f32.gmra.mrb[0].mxu0 %v526
        %v720 = vpop.f32.mrb[0].mxu0
        %v721 = vadd.f32 %v506, %v720
        %v722 = vpop.f32.mrb[0].mxu0
        %v723 = vadd.f32 %v506, %v722
        %724 = vmatprep.mubr.f32.mxu0 0.0
        %725 = vmatmul.mubr.f32.gmra.mrb[0].mxu0 %v529
        %v726 = vpop.f32.mrb[0].mxu0
        %v727 = vadd.f32 %v511, %v726
        %v728 = vpop.f32.mrb[0].mxu0
        %v729 = vadd.f32 %v511, %v728
        %730 = vmatprep.mubr.f32.mxu0 0.0
        %731 = vmatmul.mubr.f32.gmra.mrb[0].mxu0 %v532
        %v732 = vpop.f32.mrb[0].mxu0
        %v733 = vadd.f32 %v516, %v732
        %v734 = vpop.f32.mrb[0].mxu0
        %v735 = vadd.f32 %v516, %v734
        %736 = vdwg.mxu0
        %v737 = vmax.f32 %v614, 0.0
        %v738 = vmax.f32 %v616, 0.0
        %v739 = vmax.f32 %v709, 0.0
        %v740 = vmax.f32 %v711, 0.0
        %v741 = vmax.f32 %v620, 0.0
        %v742 = vmax.f32 %v622, 0.0
        %v743 = vmax.f32 %v715, 0.0
        %v744 = vmax.f32 %v717, 0.0
        %v745 = vmax.f32 %v626, 0.0
        %v746 = vmax.f32 %v628, 0.0
        %v747 = vmax.f32 %v721, 0.0
        %v748 = vmax.f32 %v723, 0.0
        %v749 = vmax.f32 %v632, 0.0
        %v750 = vmax.f32 %v634, 0.0
        %v751 = vmax.f32 %v727, 0.0
        %v752 = vmax.f32 %v729, 0.0
        %v753 = vmax.f32 %v638, 0.0
        %v754 = vmax.f32 %v640, 0.0
        %v755 = vmax.f32 %v733, 0.0
        %v756 = vmax.f32 %v735, 0.0
        %v757 = vpack.c.bf16 %v741, %v737
        %v758 = vpack.c.bf16 %v742, %v738
        %v759 = vpack.c.bf16 %v743, %v739
        %v760 = vpack.c.bf16 %v744, %v740
        %v761 = vpack.c.bf16 %v749, %v745
        %v762 = vpack.c.bf16 %v750, %v746
        %v763 = vpack.c.bf16 %v751, %v747
        %v764 = vpack.c.bf16 %v752, %v748
        %v765 = vpack.c.bf16 %v753, %v753
        %v766 = vpack.c.bf16 %v754, %v754
        %v767 = vpack.c.bf16 %v755, %v755
        %v768 = vpack.c.bf16 %v756, %v756
        %v781 = vunpack.c.l.b16 %v757
        %v782 = vunpack.c.l.b16 %v758
        %v783 = vunpack.c.l.b16 %v759
        %v784 = vunpack.c.l.b16 %v760
        %v785 = vunpack.c.h.b16 %v757
        %v786 = vunpack.c.h.b16 %v758
        %v787 = vunpack.c.h.b16 %v759
        %v788 = vunpack.c.h.b16 %v760
        %v789 = vunpack.c.l.b16 %v761
        %v790 = vunpack.c.l.b16 %v762
        %v791 = vunpack.c.l.b16 %v763
        %v792 = vunpack.c.l.b16 %v764
        %v793 = vunpack.c.h.b16 %v761
        %v794 = vunpack.c.h.b16 %v762
        %v795 = vunpack.c.h.b16 %v763
        %v796 = vunpack.c.h.b16 %v764
        %v797 = vunpack.c.l.b16 %v765
        %v798 = vunpack.c.l.b16 %v766
        %v799 = vunpack.c.l.b16 %v767
        %v800 = vunpack.c.l.b16 %v768
        %v801 = vpack.c.b16 %v782, %v781
        %v802 = vpack.c.b16 %v784, %v783
        %v803 = vpack.c.b16 %v786, %v785
        %v804 = vpack.c.b16 %v788, %v787
        %v805 = vpack.c.b16 %v790, %v789
        %v806 = vpack.c.b16 %v792, %v791
        %v807 = vpack.c.b16 %v794, %v793
        %v808 = vpack.c.b16 %v796, %v795
        %v809 = vpack.c.b16 %v798, %v797
        %v810 = vpack.c.b16 %v800, %v799
        %821 = vst [vmem:[%s352] sm:$0xff] %v801
        %822 = vst [vmem:[%s352 + $0x8] sm:$0xff] %v802
        %823 = vst [vmem:[%s352 + $0x10] sm:$0xff] %v803
        %824 = vst [vmem:[%s352 + $0x18] sm:$0xff] %v804
        %825 = vst [vmem:[%s352 + $0x20] sm:$0xff] %v805
        %826 = vst [vmem:[%s352 + $0x28] sm:$0xff] %v806
        %827 = vst [vmem:[%s352 + $0x30] sm:$0xff] %v807
        %828 = vst [vmem:[%s352 + $0x38] sm:$0xff] %v808
        %829 = vst [vmem:[%s352 + $0x40] sm:$0xff] %v809
        %830 = vst [vmem:[%s352 + $0x48] sm:$0xff] %v810
        %s831 = sand.u32 %s148, 1
        %s832 = scalar_lea.sflag [#allocation4], %s831
        %s833 = sand.u32 %s148, 1
        %s834 = smul.addr %s833, 80
        %s835 = scalar_lea.vmem [#allocation11], %s834
        %s836 = sand.u32 %s30, 1
        %s837 = scalar_lea.sflag [#allocation13], %s836
        %s838 = sand.u32 %s174, 1
        %s839 = smul.addr %s838, 32
        %s840 = scalar_lea.vmem [#allocation12], %s839
        %s841 = sand.u32 %s30, 1
        %s842 = scalar_lea.sflag [#allocation13], %s841
        %s843 = sand.u32 %s200, 1
        %s844 = smul.addr %s843, 32
        %s845 = scalar_lea.vmem [#allocation14], %s844
        // Predicated region
        $region61: #{_forward_first_impl.1} parent=39 // pred_check
          %p846 = pneg %p158
        $region62: #{_forward_first_impl.1} parent=39 // pred_check_branch
          %848 = sbr.rel (%p846) target = $region64
        $region63: #{_forward_first_impl.1} parent=39 // pred_region
          %s849 = smul.u32 4, %s30
          %s851 = ssub.s32 1280, 1280
          %852 = vsyncadd %s832, %s851
          %s853 = smul.addr %s849, 64
          %s854 = scalar_lea.hbm %s5, %s853
          %s855 = sshll.u32 %s835, 4
          %s856 = int_to_ptr.vmem [resolvable:$true] %s855
          %861 = dma.vmem_to_hbm [thread:$0]  %s856, 1280, %s854, %s832, 256, 512, 16
        $region64: #{_forward_first_impl.1} parent=39 // pred_fallthru
          _
        // Predicated region
        $region65: #{_forward_first_impl.1} parent=39 // pred_check
          %p862 = pneg %p184
        $region66: #{_forward_first_impl.1} parent=39 // pred_check_branch
          %864 = sbr.rel (%p862) target = $region68
        $region67: #{_forward_first_impl.1} parent=39 // pred_region
          %s865 = smul.u32 4, %s30
          %s867 = ssub.s32 512, 512
          %868 = vsyncadd %s837, %s867
          %s869 = smul.addr %s865, 128
          %s870 = scalar_lea.hbm %s6, %s869
          %s872 = sshll.u32 %s840, 4
          %s873 = int_to_ptr.vmem [resolvable:$true] %s872
          %875 = dma.vmem_to_hbm [thread:$0]  %s873, 512, %s870, %s837
        $region68: #{_forward_first_impl.1} parent=39 // pred_fallthru
          _
        // Predicated region
        $region69: #{_forward_first_impl.1} parent=39 // pred_check
          %p876 = pneg %p210
        $region70: #{_forward_first_impl.1} parent=39 // pred_check_branch
          %878 = sbr.rel (%p876) target = $region72
        $region71: #{_forward_first_impl.1} parent=39 // pred_region
          %s879 = smul.u32 4, %s30
          %s881 = ssub.s32 512, 512
          %882 = vsyncadd %s842, %s881
          %s883 = smul.addr %s879, 128
          %s884 = scalar_lea.hbm %s7, %s883
          %s886 = sshll.u32 %s845, 4
          %s887 = int_to_ptr.vmem [resolvable:$true] %s886
          %889 = dma.vmem_to_hbm [thread:$0]  %s887, 512, %s884, %s842
        $region72: #{_forward_first_impl.1} parent=39 // pred_fallthru
          _
      $region40: #{_forward_first_impl.1} parent=5 // pred_fallthru
        _
      %p890 = scmp.le.s32.totalorder 2, %s25
      // Predicated region
      $region73: #{_forward_first_impl.1} parent=5 // pred_check
        %p891 = pneg %p890
      $region74: #{_forward_first_impl.1} parent=5 // pred_check_branch
        %893 = sbr.rel (%p891) target = $region76
      $region75: #{_forward_first_impl.1} parent=5 // pred_region
        %s894 = ssub.s32 %s25, 2
        // Predicated region
        $region77: #{_forward_first_impl.1} parent=75 // pred_check
          %p895 = pneg %p164
        $region78: #{_forward_first_impl.1} parent=75 // pred_check_branch
          %897 = sbr.rel (%p895) target = $region80
        $region79: #{_forward_first_impl.1} parent=75 // pred_region
          %s898 = sand.u32 %s149, 1
          %s899 = scalar_lea.sflag [#allocation4], %s898
          %s900 = sand.u32 %s149, 1
          %s901 = smul.addr %s900, 80
          %s902 = scalar_lea.vmem [#allocation11], %s901
          %903 = dma.done %s899, 1280
        $region80: #{_forward_first_impl.1} parent=75 // pred_fallthru
          _
        // Predicated region
        $region81: #{_forward_first_impl.1} parent=75 // pred_check
          %p904 = pneg %p190
        $region82: #{_forward_first_impl.1} parent=75 // pred_check_branch
          %906 = sbr.rel (%p904) target = $region84
        $region83: #{_forward_first_impl.1} parent=75 // pred_region
          %s907 = sand.u32 %s31, 1
          %s908 = scalar_lea.sflag [#allocation13], %s907
          %s909 = sand.u32 %s175, 1
          %s910 = smul.addr %s909, 32
          %s911 = scalar_lea.vmem [#allocation12], %s910
          %912 = dma.done %s908, 512
        $region84: #{_forward_first_impl.1} parent=75 // pred_fallthru
          _
        // Predicated region
        $region85: #{_forward_first_impl.1} parent=75 // pred_check
          %p913 = pneg %p216
        $region86: #{_forward_first_impl.1} parent=75 // pred_check_branch
          %915 = sbr.rel (%p913) target = $region88
        $region87: #{_forward_first_impl.1} parent=75 // pred_region
          %s916 = sand.u32 %s31, 1
          %s917 = scalar_lea.sflag [#allocation13], %s916
          %s918 = sand.u32 %s201, 1
          %s919 = smul.addr %s918, 32
          %s920 = scalar_lea.vmem [#allocation14], %s919
          %921 = dma.done %s917, 512
        $region88: #{_forward_first_impl.1} parent=75 // pred_fallthru
          _
      $region76: #{_forward_first_impl.1} parent=5 // pred_fallthru
        _
    $region6: #{_forward_first_impl.1} parent=1 // loop_footer
      %s29 = sadd.s32 1, %s25
    $region7: #{_forward_first_impl.1} parent=1 // loop_footer_branch
      %24 = sbr.rel target = $region3
    $region8: #{_forward_first_impl.1} parent=1 // loop_exit
      _
    %922 = vsyncpa [#allocation3], 1
    %s923 = scalar_lea.sflag [#allocation3], 1
    %924 = vsyncpa %s923, 1
    %925 = vsyncpa [#allocation6], 1
    %926 = vsyncpa [#allocation9], 1
    %927 = vsyncpa [#allocation4], 1
    %s928 = scalar_lea.sflag [#allocation4], 1
    %929 = vsyncpa %s928, 1
    %930 = vsyncpa [#allocation13], 1
    %s931 = scalar_lea.sflag [#allocation13], 1
    %932 = vsyncpa %s931, 1

</llo_original>
